<compile_context>
chip_gen: v7x
topology: tpu7x:2x2x1
jax: 0.10.0
libtpu: 0.0.40
codegen_flags: <defaults>
</compile_context>

<pallas_src>
import jax
import jax.numpy as jnp
from jax import lax
from jax.experimental import pallas as pl
from jax.experimental.pallas import tpu as pltpu


def _pick_tiles(C, H, W, s, itemsize):
    """Choose (cb, th, wc): channels/step, row tile, lane chunk for the E matmul."""
    # Lane chunk for the column-duplication matmul.  E is (wc, s*wc); the full
    # (W, sW) operator is block-diagonal with identical blocks, so one chunk is
    # reused across the whole row.  Prefer multiples of 128 (lane-dense).
    wc = W
    for cand in (256, 128):
        if W % cand == 0:
            wc = cand
            break

    # VMEM budget for the double-buffered input+output blocks:
    #   2 * (1 + s^2) * cb * th * W * itemsize  <=  budget
    budget = 8 * 1024 * 1024
    max_elems = max(budget // (2 * (1 + s * s) * itemsize), 1)

    # Row tile: a divisor of H, multiple of 8 when possible (sublane aligned).
    if H % 8 == 0:
        cands = [d for d in range(H, 0, -8) if H % d == 0]
    else:
        cands = [H]
    th = cands[-1]
    for d in cands:
        if d * W <= max_elems:
            th = d
            break

    # Channel coarsening: amortize ~0.35us per-step overhead for small images.
    # Capped at 8 so the in-kernel per-channel unroll stays small.
    cb = 1
    for d in range(min(C, 8), 0, -1):
        if C % d == 0 and d * th * W <= max_elems:
            cb = d
            break
    return cb, th, wc


def _make_upsample_kernel(s, cb, wc, n_chunks, W, compute_dtype, precision):
    sw = s * wc          # width of one expanded chunk
    row_len = s * W      # width of one duplicated row in the original (sH, sW) layout

    def kernel(x_ref, e_ref, o_ref):
        # x_ref: (1, cb, th, W)   e_ref: (wc, s*wc)   o_ref: (1, cb, th, s*s*W)
        e = e_ref[...]
        for ci in range(cb):
            for wi in range(n_chunks):
                x_chunk = x_ref[0, ci, :, wi * wc:(wi + 1) * wc].astype(compute_dtype)
                # Column duplication via one-hot matmul: exact (each output is
                # 1.0 * exactly one input element, f32 accumulation).
                xe = jnp.dot(
                    x_chunk, e,
                    preferred_element_type=jnp.float32,
                    precision=precision,
                ).astype(o_ref.dtype)                       # (th, s*wc)
                # Row duplication: the wrapper views the output as
                # (N, C, H, s*sW), so the s duplicated rows are s contiguous
                # lane ranges -> plain dense stores, no second matmul.
                for r in range(s):
                    lo = r * row_len + wi * sw
                    o_ref[0, ci, :, lo:lo + sw] = xe

    return kernel


def upsample_nearest_nchw(x, scale):
    """x: [N, C, H, W] -> [N, C, scale*H, scale*W], nearest neighbour."""
    s = int(scale)
    if s != scale or s < 1:
        # TODO(synk): non-integer scale factors (PyTorch floor-index rule) not implemented.
        raise NotImplementedError("only integer scale factors are supported")
    N, C, H, W = x.shape

    if x.dtype == jnp.bfloat16:
        compute_dtype = jnp.bfloat16
        precision = lax.Precision.DEFAULT     # single MXU pass; exact with a 0/1 operand
    elif x.dtype in (jnp.float32, jnp.float16):
        compute_dtype = jnp.float32
        precision = lax.Precision.HIGHEST     # multi-pass, preserves f32 copy-through
    else:
        # TODO(synk): integer dtypes need a non-MXU duplication path to stay bit-exact.
        raise NotImplementedError(f"unsupported dtype for nearest upsample: {x.dtype}")

    cb, th, wc = _pick_tiles(C, H, W, s, x.dtype.itemsize)
    n_chunks = W // wc

    # One-hot column-expansion operator: E[w, j] = (w == j // s), built directly
    # in the compute dtype (0/1 are exact in bf16).
    e_mat = (jnp.arange(wc, dtype=jnp.int32)[:, None]
             == jnp.arange(s * wc, dtype=jnp.int32)[None, :] // s
             ).astype(compute_dtype)

    kernel = _make_upsample_kernel(s, cb, wc, n_chunks, W, compute_dtype, precision)

    out2 = pl.pallas_call(
        kernel,
        out_shape=jax.ShapeDtypeStruct((N, C, H, s * s * W), x.dtype),
        grid=(N, C // cb, H // th),
        in_specs=[
            pl.BlockSpec((1, cb, th, W), lambda n, c, h: (n, c, h, 0)),
            pl.BlockSpec((wc, s * wc), lambda n, c, h: (0, 0)),   # E: VMEM-resident
        ],
        out_specs=pl.BlockSpec((1, cb, th, s * s * W), lambda n, c, h: (n, c, h, 0)),
        compiler_params=pltpu.CompilerParams(
            dimension_semantics=("parallel", "parallel", "parallel"),
            vmem_limit_bytes=32 * 1024 * 1024,
        ),
    )(x, e_mat)

    # Metadata-only reshape back to NCHW: row-major (H, s*sW) == (sH, sW).
    return out2.reshape(N, C, s * H, s * W)


class UpsamplingNearest2d:
    """Pallas TPU counterpart of the PyTorch module (NCHW input)."""

    def __init__(self, scale_factor=2.0):
        s = int(scale_factor)
        if s != scale_factor or s < 1:
            # TODO(synk): non-integer scale factors are not implemented.
            raise NotImplementedError("only integer scale factors are supported")
        self.scale_factor = s

    def __call__(self, x):
        return upsample_nearest_nchw(x, self.scale_factor)


if __name__ == "__main__":
    key = jax.random.PRNGKey(0)
    N, C, H, W = 2, 4, 16, 16
    x = jax.random.normal(key, (N, C, H, W), dtype=jnp.float32)

    module = UpsamplingNearest2d(scale_factor=2.0)
    fwd = jax.jit(module.__call__)

    # f32 path: out[n,c,y,x] = in[n,c,y//2,x//2] (tight tolerance, catches any
    # precision regression to a truncated-bf16 matmul path).
    y = fwd(x)
    jax.block_until_ready(y)
    assert y.shape == (N, C, 2 * H, 2 * W), y.shape
    ref = jnp.repeat(jnp.repeat(x, 2, axis=2), 2, axis=3)
    max_err = float(jnp.max(jnp.abs(y - ref)))
    assert max_err <= 1e-6, max_err

    # bf16 path: must be bit-exact (single-pass MXU with a 0/1 operand).
    xb = x.astype(jnp.bfloat16)
    yb = fwd(xb)
    jax.block_until_ready(yb)
    refb = jnp.repeat(jnp.repeat(xb, 2, axis=2), 2, axis=3)
    assert bool(jnp.array_equal(yb, refb))

    print("KERNEL_OK")
</pallas_src>

<mosaic_0001>
module attributes {stable_mosaic.version = 11 : i64} {
  func.func @kernel(%arg0: i32, %arg1: i32, %arg2: i32, %arg3: memref<1x4x16x16xf32, #tpu.memory_space<vmem>>, %arg4: memref<16x32xf32, #tpu.memory_space<vmem>>, %arg5: memref<1x4x16x64xf32, #tpu.memory_space<vmem>>) attributes {dimension_semantics = [#tpu.dimension_semantics<parallel>, #tpu.dimension_semantics<parallel>, #tpu.dimension_semantics<parallel>], iteration_bounds = array<i64: 2, 1, 1>, scalar_prefetch = 0 : i64, scratch_operands = 0 : i64, tpu.core_type = #tpu.core_type<tc>, window_params = [{transform_indices = @transform_0, window_bounds = array<i64: 1, 4, 16, 16>}, {pipeline_mode = #tpu.pipeline_mode<synchronous>, transform_indices = @transform_1, window_bounds = array<i64: 16, 32>}, {transform_indices = @transform_2, window_bounds = array<i64: 1, 4, 16, 64>}]} {
    %c0 = arith.constant 0 : index
    %c0_0 = arith.constant 0 : index
    %0 = vector.load %arg4[%c0, %c0_0] : memref<16x32xf32, #tpu.memory_space<vmem>>, vector<16x32xf32>
    %c0_1 = arith.constant 0 : index
    %c0_2 = arith.constant 0 : index
    %c0_3 = arith.constant 0 : index
    %c0_4 = arith.constant 0 : index
    %1 = vector.load %arg3[%c0_1, %c0_2, %c0_3, %c0_4] : memref<1x4x16x16xf32, #tpu.memory_space<vmem>>, vector<1x1x16x16xf32>
    %2 = vector.shape_cast %1 : vector<1x1x16x16xf32> to vector<16x16xf32>
    %cst = arith.constant dense<0.000000e+00> : vector<16x32xf32>
    %3 = tpu.matmul %2, %0, %cst {dimension_numbers = #tpu.dot_dimension_numbers<[1], [0], [0], [1], [0, 0, 1, 1], [], []>, precision = #tpu.contract_precision<fp32>} : vector<16x16xf32>, vector<16x32xf32>, vector<16x32xf32> -> vector<16x32xf32>
    %c0_5 = arith.constant 0 : index
    %c0_6 = arith.constant 0 : index
    %c0_7 = arith.constant 0 : index
    %c0_8 = arith.constant 0 : index
    %4 = vector.load %arg5[%c0_5, %c0_6, %c0_7, %c0_8] : memref<1x4x16x64xf32, #tpu.memory_space<vmem>>, vector<1x1x16x32xf32>
    %5 = vector.shape_cast %4 : vector<1x1x16x32xf32> to vector<16x32xf32>
    %6 = vector.shape_cast %3 : vector<16x32xf32> to vector<1x1x16x32xf32>
    tpu.vector_store %arg5[%c0_5, %c0_6, %c0_7, %c0_8], %6 {strides = array<i32>} : memref<1x4x16x64xf32, #tpu.memory_space<vmem>>, vector<1x1x16x32xf32>,
    %c0_9 = arith.constant 0 : index
    %c0_10 = arith.constant 0 : index
    %c0_11 = arith.constant 0 : index
    %c32 = arith.constant 32 : index
    %7 = vector.load %arg5[%c0_9, %c0_10, %c0_11, %c32] : memref<1x4x16x64xf32, #tpu.memory_space<vmem>>, vector<1x1x16x32xf32>
    %8 = vector.shape_cast %7 : vector<1x1x16x32xf32> to vector<16x32xf32>
    %9 = vector.shape_cast %3 : vector<16x32xf32> to vector<1x1x16x32xf32>
    tpu.vector_store %arg5[%c0_9, %c0_10, %c0_11, %c32], %9 {strides = array<i32>} : memref<1x4x16x64xf32, #tpu.memory_space<vmem>>, vector<1x1x16x32xf32>,
    %c0_12 = arith.constant 0 : index
    %c1 = arith.constant 1 : index
    %c0_13 = arith.constant 0 : index
    %c0_14 = arith.constant 0 : index
    %10 = vector.load %arg3[%c0_12, %c1, %c0_13, %c0_14] : memref<1x4x16x16xf32, #tpu.memory_space<vmem>>, vector<1x1x16x16xf32>
    %11 = vector.shape_cast %10 : vector<1x1x16x16xf32> to vector<16x16xf32>
    %cst_15 = arith.constant dense<0.000000e+00> : vector<16x32xf32>
    %12 = tpu.matmul %11, %0, %cst_15 {dimension_numbers = #tpu.dot_dimension_numbers<[1], [0], [0], [1], [0, 0, 1, 1], [], []>, precision = #tpu.contract_precision<fp32>} : vector<16x16xf32>, vector<16x32xf32>, vector<16x32xf32> -> vector<16x32xf32>
    %c0_16 = arith.constant 0 : index
    %c1_17 = arith.constant 1 : index
    %c0_18 = arith.constant 0 : index
    %c0_19 = arith.constant 0 : index
    %13 = vector.load %arg5[%c0_16, %c1_17, %c0_18, %c0_19] : memref<1x4x16x64xf32, #tpu.memory_space<vmem>>, vector<1x1x16x32xf32>
    %14 = vector.shape_cast %13 : vector<1x1x16x32xf32> to vector<16x32xf32>
    %15 = vector.shape_cast %12 : vector<16x32xf32> to vector<1x1x16x32xf32>
    tpu.vector_store %arg5[%c0_16, %c1_17, %c0_18, %c0_19], %15 {strides = array<i32>} : memref<1x4x16x64xf32, #tpu.memory_space<vmem>>, vector<1x1x16x32xf32>,
    %c0_20 = arith.constant 0 : index
    %c1_21 = arith.constant 1 : index
    %c0_22 = arith.constant 0 : index
    %c32_23 = arith.constant 32 : index
    %16 = vector.load %arg5[%c0_20, %c1_21, %c0_22, %c32_23] : memref<1x4x16x64xf32, #tpu.memory_space<vmem>>, vector<1x1x16x32xf32>
    %17 = vector.shape_cast %16 : vector<1x1x16x32xf32> to vector<16x32xf32>
    %18 = vector.shape_cast %12 : vector<16x32xf32> to vector<1x1x16x32xf32>
    tpu.vector_store %arg5[%c0_20, %c1_21, %c0_22, %c32_23], %18 {strides = array<i32>} : memref<1x4x16x64xf32, #tpu.memory_space<vmem>>, vector<1x1x16x32xf32>,
    %c0_24 = arith.constant 0 : index
    %c2 = arith.constant 2 : index
    %c0_25 = arith.constant 0 : index
    %c0_26 = arith.constant 0 : index
    %19 = vector.load %arg3[%c0_24, %c2, %c0_25, %c0_26] : memref<1x4x16x16xf32, #tpu.memory_space<vmem>>, vector<1x1x16x16xf32>
    %20 = vector.shape_cast %19 : vector<1x1x16x16xf32> to vector<16x16xf32>
    %cst_27 = arith.constant dense<0.000000e+00> : vector<16x32xf32>
    %21 = tpu.matmul %20, %0, %cst_27 {dimension_numbers = #tpu.dot_dimension_numbers<[1], [0], [0], [1], [0, 0, 1, 1], [], []>, precision = #tpu.contract_precision<fp32>} : vector<16x16xf32>, vector<16x32xf32>, vector<16x32xf32> -> vector<16x32xf32>
    %c0_28 = arith.constant 0 : index
    %c2_29 = arith.constant 2 : index
    %c0_30 = arith.constant 0 : index
    %c0_31 = arith.constant 0 : index
    %22 = vector.load %arg5[%c0_28, %c2_29, %c0_30, %c0_31] : memref<1x4x16x64xf32, #tpu.memory_space<vmem>>, vector<1x1x16x32xf32>
    %23 = vector.shape_cast %22 : vector<1x1x16x32xf32> to vector<16x32xf32>
    %24 = vector.shape_cast %21 : vector<16x32xf32> to vector<1x1x16x32xf32>
    tpu.vector_store %arg5[%c0_28, %c2_29, %c0_30, %c0_31], %24 {strides = array<i32>} : memref<1x4x16x64xf32, #tpu.memory_space<vmem>>, vector<1x1x16x32xf32>,
    %c0_32 = arith.constant 0 : index
    %c2_33 = arith.constant 2 : index
    %c0_34 = arith.constant 0 : index
    %c32_35 = arith.constant 32 : index
    %25 = vector.load %arg5[%c0_32, %c2_33, %c0_34, %c32_35] : memref<1x4x16x64xf32, #tpu.memory_space<vmem>>, vector<1x1x16x32xf32>
    %26 = vector.shape_cast %25 : vector<1x1x16x32xf32> to vector<16x32xf32>
    %27 = vector.shape_cast %21 : vector<16x32xf32> to vector<1x1x16x32xf32>
    tpu.vector_store %arg5[%c0_32, %c2_33, %c0_34, %c32_35], %27 {strides = array<i32>} : memref<1x4x16x64xf32, #tpu.memory_space<vmem>>, vector<1x1x16x32xf32>,
    %c0_36 = arith.constant 0 : index
    %c3 = arith.constant 3 : index
    %c0_37 = arith.constant 0 : index
    %c0_38 = arith.constant 0 : index
    %28 = vector.load %arg3[%c0_36, %c3, %c0_37, %c0_38] : memref<1x4x16x16xf32, #tpu.memory_space<vmem>>, vector<1x1x16x16xf32>
    %29 = vector.shape_cast %28 : vector<1x1x16x16xf32> to vector<16x16xf32>
    %cst_39 = arith.constant dense<0.000000e+00> : vector<16x32xf32>
    %30 = tpu.matmul %29, %0, %cst_39 {dimension_numbers = #tpu.dot_dimension_numbers<[1], [0], [0], [1], [0, 0, 1, 1], [], []>, precision = #tpu.contract_precision<fp32>} : vector<16x16xf32>, vector<16x32xf32>, vector<16x32xf32> -> vector<16x32xf32>
    %c0_40 = arith.constant 0 : index
    %c3_41 = arith.constant 3 : index
    %c0_42 = arith.constant 0 : index
    %c0_43 = arith.constant 0 : index
    %31 = vector.load %arg5[%c0_40, %c3_41, %c0_42, %c0_43] : memref<1x4x16x64xf32, #tpu.memory_space<vmem>>, vector<1x1x16x32xf32>
    %32 = vector.shape_cast %31 : vector<1x1x16x32xf32> to vector<16x32xf32>
    %33 = vector.shape_cast %30 : vector<16x32xf32> to vector<1x1x16x32xf32>
    tpu.vector_store %arg5[%c0_40, %c3_41, %c0_42, %c0_43], %33 {strides = array<i32>} : memref<1x4x16x64xf32, #tpu.memory_space<vmem>>, vector<1x1x16x32xf32>,
    %c0_44 = arith.constant 0 : index
    %c3_45 = arith.constant 3 : index
    %c0_46 = arith.constant 0 : index
    %c32_47 = arith.constant 32 : index
    %34 = vector.load %arg5[%c0_44, %c3_45, %c0_46, %c32_47] : memref<1x4x16x64xf32, #tpu.memory_space<vmem>>, vector<1x1x16x32xf32>
    %35 = vector.shape_cast %34 : vector<1x1x16x32xf32> to vector<16x32xf32>
    %36 = vector.shape_cast %30 : vector<16x32xf32> to vector<1x1x16x32xf32>
    tpu.vector_store %arg5[%c0_44, %c3_45, %c0_46, %c32_47], %36 {strides = array<i32>} : memref<1x4x16x64xf32, #tpu.memory_space<vmem>>, vector<1x1x16x32xf32>,
    return
  }
  func.func @transform_0(%arg0: i32, %arg1: i32, %arg2: i32) -> (i32, i32, i32, i32) {
    %c0_i32 = arith.constant 0 : i32
    %c0_i32_0 = arith.constant 0 : i32
    return %arg0, %arg1, %arg2, %c0_i32 : i32, i32, i32, i32
  }
  func.func @transform_1(%arg0: i32, %arg1: i32, %arg2: i32) -> (i32, i32) {
    %c0_i32 = arith.constant 0 : i32
    %c0_i32_0 = arith.constant 0 : i32
    %c0_i32_1 = arith.constant 0 : i32
    return %c0_i32, %c0_i32_0 : i32, i32
  }
  func.func @transform_2(%arg0: i32, %arg1: i32, %arg2: i32) -> (i32, i32, i32, i32) {
    %c0_i32 = arith.constant 0 : i32
    %c0_i32_0 = arith.constant 0 : i32
    return %arg0, %arg1, %arg2, %c0_i32 : i32, i32, i32, i32
  }
}

</mosaic_0001>

<llo_original>
// kernel: a_call__.1
$region0: #{a_call__.1}
  #allocation0 [shape = 'u32[]', space=smem, size = 0x4, offset = 0x4, fixed_abs, tag = 'smem constant byte address 0x4 - core index']
  #allocation1 [shape = 'u32[144,128]{1,0:T(1,128)}', space=vmem, size = 0x12000, scoped, tag = 'internal scratch']
  %s0 = inlined_call_operand.hbm [shape: f32[2,4,16,16], index: 0, kind: input, shape index: {}]
  %s1 = inlined_call_operand.vmem [shape: f32[16,32], index: 1, kind: input, shape index: {}]
  %s2 = inlined_call_operand.vmem [shape: f32[2,4,16,64], index: 2, kind: output, shape index: {}]
  %s3 = sld [smem:[#allocation0]]
  $region45: #{a_call__.1} parent=0
    _
  %s5 = ssub.s32 1, %s3
  %s6 = scalar_select 0, %s5, %s3
  $region1: #{a_call__.1} parent=0
    #allocation2 [shape = 'u8[65536]{0}', space=vmem, size = 0x10000, scoped, tag = 'input window, operand 0']
    #allocation3 [shape = 's32[2]{0}', space=sflag, size = 0x8, scoped, tag = 'scoped memory for a_call__.1']
    %7 = vsyncpa [#allocation3], 0
    %s8 = scalar_lea.sflag [#allocation3], 1
    %9 = vsyncpa %s8, 0
    loop: start=0, step=1, limit=4
    $region2: #{a_call__.1} parent=1 // loop_pre_header
      _
    $region3: #{a_call__.1} parent=1 // loop_header
      %s11 = sphi 0, %s15
      %p12 = scmp.ge.s32.totalorder %s11, 4
      %s18 = sphi 0, %s37
      %s19 = sphi 0, %s33
      %s20 = sphi 0, %s29
      %s21 = sphi 0, %s18
      %s22 = sphi 0, %s19
      %s23 = sphi 0, %s20
      %s24 = sphi 0, %s21
      %s25 = sphi 0, %s22
      %s26 = sphi 0, %s23
      %s44 = sphi 0, %s46
      %s47 = sphi 0, %s44
      %s48 = sphi 0, %s47
      %s64 = sphi 0, %s48
      %s68 = sphi 0, %s68
      %s70 = sphi 0, %s68
      %s71 = sphi 0, %s70
      %s85 = sphi 0, %s71
      %s95 = sphi 0, %s97
      %s98 = sphi 0, %s95
      %s99 = sphi 0, %s98
      %s115 = sphi 0, %s99
    $region4: #{a_call__.1} parent=1 // loop_header_branch
      %14 = sbr.rel (%p12) target = $region8
    $region5: #{a_call__.1} parent=1 // loop_body
      %s16 = ssub.s32 %s11, 1
      %s17 = ssub.s32 %s11, 2
      %s27 = sadd.s32 1, %s20
      %p28 = scmp.ge.s32.totalorder %s27, 1
      %s29 = scalar_select %p28, 0, %s27
      %s30 = sadd.s32 1, %s19
      %s31 = scalar_select %p28, %s30, %s19
      %p32 = scmp.ge.s32.totalorder %s31, 1
      %s33 = scalar_select %p32, 0, %s31
      %s34 = sadd.s32 1, %s18
      %s35 = scalar_select %p32, %s34, %s18
      %p36 = scmp.ge.s32.totalorder %s35, 2
      %s37 = scalar_select %p36, 0, %s35
      %s38 = ssub.s32 %s18, %s37
      %s39 = ssub.s32 %s19, %s33
      %s40 = sor.u32 %s38, %s39
      %s41 = ssub.s32 %s20, %s29
      %s42 = sor.u32 %s40, %s41
      %p43 = scmp.eq.s32.totalorder %s42, 0
      %s45 = sadd.s32 %s44, 1
      %s46 = scalar_select %p43, %s44, %s45
      %p49 = pneg %p43
      %p50 = scmp.eq.s32.totalorder %s11, 1
      %p51 = por %p49, %p50
      %p52 = scmp.ne.s32.totalorder %s44, %s47
      %p53 = scmp.eq.s32.totalorder %s11, 0
      %p54 = por %p52, %p53
      %p55 = scmp.ne.s32.totalorder %s44, %s47
      %p56 = scmp.eq.s32.totalorder %s16, 1
      %p57 = por %p55, %p56
      %p58 = scmp.ne.s32.totalorder %s47, %s48
      %p59 = scmp.eq.s32.totalorder %s16, 0
      %p60 = por %p58, %p59
      %p61 = scmp.ne.s32.totalorder %s47, %s48
      %p62 = scmp.eq.s32.totalorder %s17, 1
      %p63 = por %p61, %p62
      %p65 = scmp.ne.s32.totalorder %s48, %s64
      %p66 = scmp.eq.s32.totalorder %s17, 0
      %p67 = por %p65, %p66
      %s69 = sadd.s32 %s68, 1
      %p72 = scmp.eq.s32.totalorder %s11, 1
      %p73 = scmp.ne.s32.totalorder %s68, %s70
      %p74 = scmp.eq.s32.totalorder %s11, 0
      %p75 = por %p73, %p74
      %p76 = scmp.ne.s32.totalorder %s68, %s70
      %p77 = scmp.eq.s32.totalorder %s16, 1
      %p78 = por %p76, %p77
      %p79 = scmp.ne.s32.totalorder %s70, %s71
      %p80 = scmp.eq.s32.totalorder %s16, 0
      %p81 = por %p79, %p80
      %p82 = scmp.ne.s32.totalorder %s70, %s71
      %p83 = scmp.eq.s32.totalorder %s17, 1
      %p84 = por %p82, %p83
      %p86 = scmp.ne.s32.totalorder %s71, %s85
      %p87 = scmp.eq.s32.totalorder %s17, 0
      %p88 = por %p86, %p87
      %s89 = ssub.s32 %s18, %s37
      %s90 = ssub.s32 %s19, %s33
      %s91 = sor.u32 %s89, %s90
      %s92 = ssub.s32 %s20, %s29
      %s93 = sor.u32 %s91, %s92
      %p94 = scmp.eq.s32.totalorder %s93, 0
      %s96 = sadd.s32 %s95, 1
      %s97 = scalar_select %p94, %s95, %s96
      %p100 = pneg %p94
      %p101 = scmp.eq.s32.totalorder %s11, 1
      %p102 = por %p100, %p101
      %p103 = scmp.ne.s32.totalorder %s95, %s98
      %p104 = scmp.eq.s32.totalorder %s11, 0
      %p105 = por %p103, %p104
      %p106 = scmp.ne.s32.totalorder %s95, %s98
      %p107 = scmp.eq.s32.totalorder %s16, 1
      %p108 = por %p106, %p107
      %p109 = scmp.ne.s32.totalorder %s98, %s99
      %p110 = scmp.eq.s32.totalorder %s16, 0
      %p111 = por %p109, %p110
      %p112 = scmp.ne.s32.totalorder %s98, %s99
      %p113 = scmp.eq.s32.totalorder %s17, 1
      %p114 = por %p112, %p113
      %p116 = scmp.ne.s32.totalorder %s99, %s115
      %p117 = scmp.eq.s32.totalorder %s17, 0
      %p118 = por %p116, %p117
      %p119 = scmp.le.s32.totalorder 1, %s11
      %p120 = scmp.lt.s32.totalorder %s11, 3
      %p121 = pnand %p119, %p120
      %p122 = pneg %p121
      // Predicated region
      $region9: #{a_call__.1} parent=5 // pred_check
        _
      $region10: #{a_call__.1} parent=5 // pred_check_branch
        %124 = sbr.rel (%p121) target = $region12
      $region11: #{a_call__.1} parent=5 // pred_region
        %s125 = ssub.s32 %s11, 1
        // Predicated region
        $region13: #{a_call__.1} parent=11 // pred_check
          %p126 = pneg %p81
        $region14: #{a_call__.1} parent=11 // pred_check_branch
          %128 = sbr.rel (%p126) target = $region16
        $region15: #{a_call__.1} parent=11 // pred_region
          _
        $region16: #{a_call__.1} parent=11 // pred_fallthru
          _
      $region12: #{a_call__.1} parent=5 // pred_fallthru
        _
      %p129 = scmp.lt.s32.totalorder %s11, 2
      // Predicated region
      $region17: #{a_call__.1} parent=5 // pred_check
        %p130 = pneg %p129
      $region18: #{a_call__.1} parent=5 // pred_check_branch
        %132 = sbr.rel (%p130) target = $region20
      $region19: #{a_call__.1} parent=5 // pred_region
        // Predicated region
        $region21: #{a_call__.1} parent=19 // pred_check
          %p133 = pneg %p54
        $region22: #{a_call__.1} parent=19 // pred_check_branch
          %135 = sbr.rel (%p133) target = $region24
        $region23: #{a_call__.1} parent=19 // pred_region
          %s136 = sand.u32 %s44, 1
          %s137 = scalar_lea.sflag [#allocation3], %s136
          %s138 = sand.u32 %s44, 1
          %s139 = smul.addr %s138, 64
          %s140 = scalar_lea.vmem [#allocation2], %s139
          %s141 = smul.u32 4, %s19
          %s142 = smul.u32 2, %s20
          %s144 = ssub.s32 1024, 1024
          %145 = vsyncadd %s137, %s144
          %s146 = smul.addr %s141, 2
          %s147 = sadd.s32 %s142, %s146
          %s148 = smul.addr %s18, 8
          %s149 = sadd.s32 %s147, %s148
          %s150 = smul.addr %s149, 128
          %s151 = scalar_lea.hbm %s0, %s150
          %s152 = sshll.u32 %s140, 4
          %s153 = int_to_ptr.vmem [resolvable:$true] %s152
          %158 = dma.hbm_to_vmem [thread:$0]  %s151, 1024, %s153, %s137, 128, 128, 8
        $region24: #{a_call__.1} parent=19 // pred_fallthru
          _
      $region20: #{a_call__.1} parent=5 // pred_fallthru
        _
      %p159 = scmp.le.s32.totalorder 1, %s11
      %p160 = scmp.lt.s32.totalorder %s11, 3
      %p161 = pnand %p159, %p160
      %p162 = pneg %p161
      // Predicated region
      $region25: #{a_call__.1} parent=5 // pred_check
        _
      $region26: #{a_call__.1} parent=5 // pred_check_branch
        %164 = sbr.rel (%p161) target = $region28
      $region27: #{a_call__.1} parent=5 // pred_region
        %s165 = ssub.s32 %s11, 1
        %s166 = sand.u32 %s47, 1
        %s167 = scalar_lea.sflag [#allocation3], %s166
        %s168 = sand.u32 %s47, 1
        %s169 = smul.addr %s168, 64
        %s170 = scalar_lea.vmem [#allocation2], %s169
        // Predicated region
        $region29: #{a_call__.1} parent=27 // pred_check
          %p171 = pneg %p60
        $region30: #{a_call__.1} parent=27 // pred_check_branch
          %173 = sbr.rel (%p171) target = $region32
        $region31: #{a_call__.1} parent=27 // pred_region
          %174 = dma.done %s167, 1024
        $region32: #{a_call__.1} parent=27 // pred_fallthru
          _
        %s175 = sand.u32 %s47, 1
        %s176 = scalar_lea.sflag [#allocation3], %s175
        %s177 = sand.u32 %s47, 1
        %s178 = smul.addr %s177, 64
        %s179 = scalar_lea.vmem [#allocation2], %s178
        %p180 = pneg %p60
        %p181 = pneg %p57
        %p182 = pneg %p81
        %p183 = pneg %p78
        %p184 = pneg %p111
        %p185 = pneg %p108
        %s186 = smul.u32 4, %s22
        %s187 = smul.u32 2, %s23
        %p188 = scmp.lt.s32.totalorder %s21, 1
        %s189 = scalar_select %p188, %s21, 1
        %p190 = scmp.lt.s32.totalorder %s186, 3
        %s191 = scalar_select %p190, %s186, 3
        %p192 = scmp.lt.s32.totalorder %s187, 1
        %s193 = scalar_select %p192, %s187, 1
        %s194 = smul.addr %s191, 2
        %s195 = sadd.s32 %s193, %s194
        %s196 = smul.addr %s189, 8
        %s197 = sadd.s32 %s195, %s196
        %s198 = smul.addr %s197, 8
        %s199 = scalar_lea.vmem %s2, %s198
        %s200 = smul.u32 4, %s22
        %s201 = smul.u32 2, %s23
        %s202 = smul.u32 4, %s22
        %s203 = smul.u32 2, %s23
        %p204 = scmp.lt.s32.totalorder %s21, 1
        %s205 = scalar_select %p204, %s21, 1
        %p206 = scmp.lt.s32.totalorder %s202, 3
        %s207 = scalar_select %p206, %s202, 3
        %p208 = scmp.lt.s32.totalorder %s203, 1
        %s209 = scalar_select %p208, %s203, 1
        %s210 = smul.addr %s207, 2
        %s211 = sadd.s32 %s209, %s210
        %s212 = smul.addr %s205, 8
        %s213 = sadd.s32 %s211, %s212
        %s214 = smul.addr %s213, 8
        %s215 = scalar_lea.vmem %s2, %s214
        %s216 = smul.u32 4, %s22
        %s217 = smul.u32 2, %s23
        %v218 = vld [vmem:[%s1] sm:$0xff]
        %v219 = vld [vmem:[%s1 + $0x8] sm:$0xff]
        %v220 = vld [vmem:[%s170] sm:$0xff]
        %v221 = vld [vmem:[%s170 + $0x8] sm:$0xff]
        %vm222 = vcmask 130048
        %v224 = vsel %vm222, %v220, 0
        %v227 = vsel %vm222, %v221, 0
        %229 = vmatprep.subr.mxu0 0.0
        %v230 = vand.u32 %v218, 4294901760
        %231 = vmatpush1.msra.mxu0 %v230
        %232 = vmatprep.subr.mxu0 0.0
        %v233 = vand.u32 %v219, 4294901760
        %234 = vmatpush1.msra.mxu0 %v233
        %235 = vmatprep.subr.mxu0 0.0
        %236 = vmatpush1.msra.mxu0 0.0
        %237 = vmatprep.subr.mxu0 0.0
        %238 = vmatpush1.msra.mxu0 0.0
        %239 = vmatprep.subr.mxu0 0.0
        %240 = vmatpush1.msra.mxu0 0.0
        %241 = vmatprep.subr.mxu0 0.0
        %242 = vmatpush1.msra.mxu0 0.0
        %243 = vmatprep.subr.mxu0 0.0
        %244 = vmatpush1.msra.mxu0 0.0
        %245 = vmatprep.subr.mxu0 0.0
        %246 = vmatpush1.msra.mxu0 0.0
        %247 = vmatprep.subr.mxu0 0.0
        %248 = vmatpush1.msra.mxu0 0.0
        %249 = vmatprep.subr.mxu0 0.0
        %250 = vmatpush1.msra.mxu0 0.0
        %251 = vmatprep.subr.mxu0 0.0
        %252 = vmatpush1.msra.mxu0 0.0
        %253 = vmatprep.subr.mxu0 0.0
        %254 = vmatpush1.msra.mxu0 0.0
        %255 = vmatprep.subr.mxu0 0.0
        %256 = vmatpush1.msra.mxu0 0.0
        %257 = vmatprep.subr.mxu0 0.0
        %258 = vmatpush1.msra.mxu0 0.0
        %259 = vmatprep.subr.mxu0 0.0
        %260 = vmatpush1.msra.mxu0 0.0
        %261 = vmatprep.subr.mxu0 0.0
        %262 = vmatpush1.msra.mxu0 0.0
        %263 = vmatprep.subr.mxu0 0.0
        %264 = vmatpush1.msra.mxu0 0.0
        %265 = vmatprep.subr.mxu0 0.0
        %266 = vmatpush1.msra.mxu0 0.0
        %267 = vmatprep.subr.mxu0 0.0
        %268 = vmatpush1.msra.mxu0 0.0
        %269 = vmatprep.subr.mxu0 0.0
        %270 = vmatpush1.msra.mxu0 0.0
        %271 = vmatprep.subr.mxu0 0.0
        %272 = vmatpush1.msra.mxu0 0.0
        %273 = vmatprep.subr.mxu0 0.0
        %274 = vmatpush1.msra.mxu0 0.0
        %275 = vmatprep.subr.mxu0 0.0
        %276 = vmatpush1.msra.mxu0 0.0
        %277 = vmatprep.subr.mxu0 0.0
        %278 = vmatpush1.msra.mxu0 0.0
        %279 = vmatprep.subr.mxu0 0.0
        %280 = vmatpush1.msra.mxu0 0.0
        %281 = vmatprep.subr.mxu0 0.0
        %282 = vmatpush1.msra.mxu0 0.0
        %283 = vmatprep.subr.mxu0 0.0
        %284 = vmatpush1.msra.mxu0 0.0
        %285 = vmatprep.subr.mxu0 0.0
        %286 = vmatpush1.msra.mxu0 0.0
        %287 = vmatprep.subr.mxu0 0.0
        %288 = vmatpush1.msra.mxu0 0.0
        %289 = vmatprep.subr.mxu0 0.0
        %290 = vmatpush1.msra.mxu0 0.0
        %291 = vmatprep.subr.mxu0 0.0
        %292 = vmatpush1.msra.mxu0 0.0
        %293 = vmatprep.subr.mxu0 0.0
        %294 = vmatpush1.msra.mxu0 0.0
        %295 = vmatprep.mubr.f32.mxu0 0.0
        %v296 = vand.u32 %v224, 4294901760
        %v297 = vsub.f32 %v224, %v296
        %v298 = vand.u32 %v297, 4294901760
        %v299 = vsub.f32 %v297, %v298
        %v300 = vand.u32 %v299, 4294901760
        %301 = vmatmul.mubr.f32.gmra.mrb[0].mxu0 %v300
        %v302 = vpop.f32.mrb[0].mxu0
        %v303 = vadd.f32 0.0, %v302
        %v304 = vpop.f32.mrb[0].mxu0
        %305 = vmatprep.mubr.f32.mxu0 0.0
        %v306 = vand.u32 %v227, 4294901760
        %v307 = vsub.f32 %v227, %v306
        %v308 = vand.u32 %v307, 4294901760
        %v309 = vsub.f32 %v307, %v308
        %v310 = vand.u32 %v309, 4294901760
        %311 = vmatmul.mubr.f32.gmra.mrb[0].mxu0 %v310
        %v312 = vpop.f32.mrb[0].mxu0
        %v313 = vadd.f32 0.0, %v312
        %v314 = vpop.f32.mrb[0].mxu0
        %315 = vdwg.mxu0
        %316 = vmatprep.subr.mxu0 0.0
        %v317 = vand.u32 %v218, 4294901760
        %v318 = vsub.f32 %v218, %v317
        %v319 = vand.u32 %v318, 4294901760
        %v320 = vsub.f32 %v318, %v319
        %v321 = vand.u32 %v320, 4294901760
        %322 = vmatpush1.msra.mxu0 %v321
        %323 = vmatprep.subr.mxu0 0.0
        %v324 = vand.u32 %v219, 4294901760
        %v325 = vsub.f32 %v219, %v324
        %v326 = vand.u32 %v325, 4294901760
        %v327 = vsub.f32 %v325, %v326
        %v328 = vand.u32 %v327, 4294901760
        %329 = vmatpush1.msra.mxu0 %v328
        %330 = vmatprep.subr.mxu0 0.0
        %331 = vmatpush1.msra.mxu0 0.0
        %332 = vmatprep.subr.mxu0 0.0
        %333 = vmatpush1.msra.mxu0 0.0
        %334 = vmatprep.subr.mxu0 0.0
        %335 = vmatpush1.msra.mxu0 0.0
        %336 = vmatprep.subr.mxu0 0.0
        %337 = vmatpush1.msra.mxu0 0.0
        %338 = vmatprep.subr.mxu0 0.0
        %339 = vmatpush1.msra.mxu0 0.0
        %340 = vmatprep.subr.mxu0 0.0
        %341 = vmatpush1.msra.mxu0 0.0
        %342 = vmatprep.subr.mxu0 0.0
        %343 = vmatpush1.msra.mxu0 0.0
        %344 = vmatprep.subr.mxu0 0.0
        %345 = vmatpush1.msra.mxu0 0.0
        %346 = vmatprep.subr.mxu0 0.0
        %347 = vmatpush1.msra.mxu0 0.0
        %348 = vmatprep.subr.mxu0 0.0
        %349 = vmatpush1.msra.mxu0 0.0
        %350 = vmatprep.subr.mxu0 0.0
        %351 = vmatpush1.msra.mxu0 0.0
        %352 = vmatprep.subr.mxu0 0.0
        %353 = vmatpush1.msra.mxu0 0.0
        %354 = vmatprep.subr.mxu0 0.0
        %355 = vmatpush1.msra.mxu0 0.0
        %356 = vmatprep.subr.mxu0 0.0
        %357 = vmatpush1.msra.mxu0 0.0
        %358 = vmatprep.subr.mxu0 0.0
        %359 = vmatpush1.msra.mxu0 0.0
        %360 = vmatprep.subr.mxu0 0.0
        %361 = vmatpush1.msra.mxu0 0.0
        %362 = vmatprep.subr.mxu0 0.0
        %363 = vmatpush1.msra.mxu0 0.0
        %364 = vmatprep.subr.mxu0 0.0
        %365 = vmatpush1.msra.mxu0 0.0
        %366 = vmatprep.subr.mxu0 0.0
        %367 = vmatpush1.msra.mxu0 0.0
        %368 = vmatprep.subr.mxu0 0.0
        %369 = vmatpush1.msra.mxu0 0.0
        %370 = vmatprep.subr.mxu0 0.0
        %371 = vmatpush1.msra.mxu0 0.0
        %372 = vmatprep.subr.mxu0 0.0
        %373 = vmatpush1.msra.mxu0 0.0
        %374 = vmatprep.subr.mxu0 0.0
        %375 = vmatpush1.msra.mxu0 0.0
        %376 = vmatprep.subr.mxu0 0.0
        %377 = vmatpush1.msra.mxu0 0.0
        %378 = vmatprep.subr.mxu0 0.0
        %379 = vmatpush1.msra.mxu0 0.0
        %380 = vmatprep.subr.mxu0 0.0
        %381 = vmatpush1.msra.mxu0 0.0
        %382 = vmatprep.subr.mxu0 0.0
        %383 = vmatpush1.msra.mxu0 0.0
        %384 = vmatprep.subr.mxu0 0.0
        %385 = vmatpush1.msra.mxu0 0.0
        %386 = vmatprep.subr.mxu0 0.0
        %387 = vmatpush1.msra.mxu0 0.0
        %388 = vmatprep.subr.mxu0 0.0
        %389 = vmatpush1.msra.mxu0 0.0
        %390 = vmatprep.mubr.f32.mxu0 0.0
        %v391 = vand.u32 %v224, 4294901760
        %392 = vmatmul.mubr.f32.gmra.mrb[0].mxu0 %v391
        %v393 = vpop.f32.mrb[0].mxu0
        %v394 = vadd.f32 %v303, %v393
        %v395 = vpop.f32.mrb[0].mxu0
        %396 = vmatprep.mubr.f32.mxu0 0.0
        %v397 = vand.u32 %v227, 4294901760
        %398 = vmatmul.mubr.f32.gmra.mrb[0].mxu0 %v397
        %v399 = vpop.f32.mrb[0].mxu0
        %v400 = vadd.f32 %v313, %v399
        %v401 = vpop.f32.mrb[0].mxu0
        %402 = vdwg.mxu0
        %403 = vmatprep.subr.mxu0 0.0
        %v404 = vand.u32 %v218, 4294901760
        %v405 = vsub.f32 %v218, %v404
        %406 = vmatpush1.msra.mxu0 %v405
        %407 = vmatprep.subr.mxu0 0.0
        %v408 = vand.u32 %v219, 4294901760
        %v409 = vsub.f32 %v219, %v408
        %410 = vmatpush1.msra.mxu0 %v409
        %411 = vmatprep.subr.mxu0 0.0
        %412 = vmatpush1.msra.mxu0 0.0
        %413 = vmatprep.subr.mxu0 0.0
        %414 = vmatpush1.msra.mxu0 0.0
        %415 = vmatprep.subr.mxu0 0.0
        %416 = vmatpush1.msra.mxu0 0.0
        %417 = vmatprep.subr.mxu0 0.0
        %418 = vmatpush1.msra.mxu0 0.0
        %419 = vmatprep.subr.mxu0 0.0
        %420 = vmatpush1.msra.mxu0 0.0
        %421 = vmatprep.subr.mxu0 0.0
        %422 = vmatpush1.msra.mxu0 0.0
        %423 = vmatprep.subr.mxu0 0.0
        %424 = vmatpush1.msra.mxu0 0.0
        %425 = vmatprep.subr.mxu0 0.0
        %426 = vmatpush1.msra.mxu0 0.0
        %427 = vmatprep.subr.mxu0 0.0
        %428 = vmatpush1.msra.mxu0 0.0
        %429 = vmatprep.subr.mxu0 0.0
        %430 = vmatpush1.msra.mxu0 0.0
        %431 = vmatprep.subr.mxu0 0.0
        %432 = vmatpush1.msra.mxu0 0.0
        %433 = vmatprep.subr.mxu0 0.0
        %434 = vmatpush1.msra.mxu0 0.0
        %435 = vmatprep.subr.mxu0 0.0
        %436 = vmatpush1.msra.mxu0 0.0
        %437 = vmatprep.subr.mxu0 0.0
        %438 = vmatpush1.msra.mxu0 0.0
        %439 = vmatprep.subr.mxu0 0.0
        %440 = vmatpush1.msra.mxu0 0.0
        %441 = vmatprep.subr.mxu0 0.0
        %442 = vmatpush1.msra.mxu0 0.0
        %443 = vmatprep.subr.mxu0 0.0
        %444 = vmatpush1.msra.mxu0 0.0
        %445 = vmatprep.subr.mxu0 0.0
        %446 = vmatpush1.msra.mxu0 0.0
        %447 = vmatprep.subr.mxu0 0.0
        %448 = vmatpush1.msra.mxu0 0.0
        %449 = vmatprep.subr.mxu0 0.0
        %450 = vmatpush1.msra.mxu0 0.0
        %451 = vmatprep.subr.mxu0 0.0
        %452 = vmatpush1.msra.mxu0 0.0
        %453 = vmatprep.subr.mxu0 0.0
        %454 = vmatpush1.msra.mxu0 0.0
        %455 = vmatprep.subr.mxu0 0.0
        %456 = vmatpush1.msra.mxu0 0.0
        %457 = vmatprep.subr.mxu0 0.0
        %458 = vmatpush1.msra.mxu0 0.0
        %459 = vmatprep.subr.mxu0 0.0
        %460 = vmatpush1.msra.mxu0 0.0
        %461 = vmatprep.subr.mxu0 0.0
        %462 = vmatpush1.msra.mxu0 0.0
        %463 = vmatprep.subr.mxu0 0.0
        %464 = vmatpush1.msra.mxu0 0.0
        %465 = vmatprep.subr.mxu0 0.0
        %466 = vmatpush1.msra.mxu0 0.0
        %467 = vmatprep.subr.mxu0 0.0
        %468 = vmatpush1.msra.mxu0 0.0
        %469 = vmatprep.subr.mxu0 0.0
        %470 = vmatpush1.msra.mxu0 0.0
        %471 = vmatprep.mubr.f32.mxu0 0.0
        %v472 = vand.u32 %v224, 4294901760
        %v473 = vsub.f32 %v224, %v472
        %474 = vmatmul.mubr.f32.gmra.mrb[0].mxu0 %v473
        %v475 = vpop.f32.mrb[0].mxu0
        %v476 = vadd.f32 %v394, %v475
        %v477 = vpop.f32.mrb[0].mxu0
        %478 = vmatprep.mubr.f32.mxu0 0.0
        %v479 = vand.u32 %v227, 4294901760
        %v480 = vsub.f32 %v227, %v479
        %481 = vmatmul.mubr.f32.gmra.mrb[0].mxu0 %v480
        %v482 = vpop.f32.mrb[0].mxu0
        %v483 = vadd.f32 %v400, %v482
        %v484 = vpop.f32.mrb[0].mxu0
        %485 = vdwg.mxu0
        %486 = vmatprep.subr.mxu0 0.0
        %v487 = vand.u32 %v218, 4294901760
        %488 = vmatpush1.msra.mxu0 %v487
        %489 = vmatprep.subr.mxu0 0.0
        %v490 = vand.u32 %v219, 4294901760
        %491 = vmatpush1.msra.mxu0 %v490
        %492 = vmatprep.subr.mxu0 0.0
        %493 = vmatpush1.msra.mxu0 0.0
        %494 = vmatprep.subr.mxu0 0.0
        %495 = vmatpush1.msra.mxu0 0.0
        %496 = vmatprep.subr.mxu0 0.0
        %497 = vmatpush1.msra.mxu0 0.0
        %498 = vmatprep.subr.mxu0 0.0
        %499 = vmatpush1.msra.mxu0 0.0
        %500 = vmatprep.subr.mxu0 0.0
        %501 = vmatpush1.msra.mxu0 0.0
        %502 = vmatprep.subr.mxu0 0.0
        %503 = vmatpush1.msra.mxu0 0.0
        %504 = vmatprep.subr.mxu0 0.0
        %505 = vmatpush1.msra.mxu0 0.0
        %506 = vmatprep.subr.mxu0 0.0
        %507 = vmatpush1.msra.mxu0 0.0
        %508 = vmatprep.subr.mxu0 0.0
        %509 = vmatpush1.msra.mxu0 0.0
        %510 = vmatprep.subr.mxu0 0.0
        %511 = vmatpush1.msra.mxu0 0.0
        %512 = vmatprep.subr.mxu0 0.0
        %513 = vmatpush1.msra.mxu0 0.0
        %514 = vmatprep.subr.mxu0 0.0
        %515 = vmatpush1.msra.mxu0 0.0
        %516 = vmatprep.subr.mxu0 0.0
        %517 = vmatpush1.msra.mxu0 0.0
        %518 = vmatprep.subr.mxu0 0.0
        %519 = vmatpush1.msra.mxu0 0.0
        %520 = vmatprep.subr.mxu0 0.0
        %521 = vmatpush1.msra.mxu0 0.0
        %522 = vmatprep.subr.mxu0 0.0
        %523 = vmatpush1.msra.mxu0 0.0
        %524 = vmatprep.subr.mxu0 0.0
        %525 = vmatpush1.msra.mxu0 0.0
        %526 = vmatprep.subr.mxu0 0.0
        %527 = vmatpush1.msra.mxu0 0.0
        %528 = vmatprep.subr.mxu0 0.0
        %529 = vmatpush1.msra.mxu0 0.0
        %530 = vmatprep.subr.mxu0 0.0
        %531 = vmatpush1.msra.mxu0 0.0
        %532 = vmatprep.subr.mxu0 0.0
        %533 = vmatpush1.msra.mxu0 0.0
        %534 = vmatprep.subr.mxu0 0.0
        %535 = vmatpush1.msra.mxu0 0.0
        %536 = vmatprep.subr.mxu0 0.0
        %537 = vmatpush1.msra.mxu0 0.0
        %538 = vmatprep.subr.mxu0 0.0
        %539 = vmatpush1.msra.mxu0 0.0
        %540 = vmatprep.subr.mxu0 0.0
        %541 = vmatpush1.msra.mxu0 0.0
        %542 = vmatprep.subr.mxu0 0.0
        %543 = vmatpush1.msra.mxu0 0.0
        %544 = vmatprep.subr.mxu0 0.0
        %545 = vmatpush1.msra.mxu0 0.0
        %546 = vmatprep.subr.mxu0 0.0
        %547 = vmatpush1.msra.mxu0 0.0
        %548 = vmatprep.subr.mxu0 0.0
        %549 = vmatpush1.msra.mxu0 0.0
        %550 = vmatprep.subr.mxu0 0.0
        %551 = vmatpush1.msra.mxu0 0.0
        %552 = vmatprep.mubr.f32.mxu0 0.0
        %v553 = vand.u32 %v224, 4294901760
        %v554 = vsub.f32 %v224, %v553
        %v555 = vand.u32 %v554, 4294901760
        %556 = vmatmul.mubr.f32.gmra.mrb[0].mxu0 %v555
        %v557 = vpop.f32.mrb[0].mxu0
        %v558 = vadd.f32 %v476, %v557
        %v559 = vpop.f32.mrb[0].mxu0
        %560 = vmatprep.mubr.f32.mxu0 0.0
        %v561 = vand.u32 %v227, 4294901760
        %v562 = vsub.f32 %v227, %v561
        %v563 = vand.u32 %v562, 4294901760
        %564 = vmatmul.mubr.f32.gmra.mrb[0].mxu0 %v563
        %v565 = vpop.f32.mrb[0].mxu0
        %v566 = vadd.f32 %v483, %v565
        %v567 = vpop.f32.mrb[0].mxu0
        %568 = vdwg.mxu0
        %569 = vmatprep.subr.mxu0 0.0
        %v570 = vand.u32 %v218, 4294901760
        %v571 = vsub.f32 %v218, %v570
        %v572 = vand.u32 %v571, 4294901760
        %573 = vmatpush1.msra.mxu0 %v572
        %574 = vmatprep.subr.mxu0 0.0
        %v575 = vand.u32 %v219, 4294901760
        %v576 = vsub.f32 %v219, %v575
        %v577 = vand.u32 %v576, 4294901760
        %578 = vmatpush1.msra.mxu0 %v577
        %579 = vmatprep.subr.mxu0 0.0
        %580 = vmatpush1.msra.mxu0 0.0
        %581 = vmatprep.subr.mxu0 0.0
        %582 = vmatpush1.msra.mxu0 0.0
        %583 = vmatprep.subr.mxu0 0.0
        %584 = vmatpush1.msra.mxu0 0.0
        %585 = vmatprep.subr.mxu0 0.0
        %586 = vmatpush1.msra.mxu0 0.0
        %587 = vmatprep.subr.mxu0 0.0
        %588 = vmatpush1.msra.mxu0 0.0
        %589 = vmatprep.subr.mxu0 0.0
        %590 = vmatpush1.msra.mxu0 0.0
        %591 = vmatprep.subr.mxu0 0.0
        %592 = vmatpush1.msra.mxu0 0.0
        %593 = vmatprep.subr.mxu0 0.0
        %594 = vmatpush1.msra.mxu0 0.0
        %595 = vmatprep.subr.mxu0 0.0
        %596 = vmatpush1.msra.mxu0 0.0
        %597 = vmatprep.subr.mxu0 0.0
        %598 = vmatpush1.msra.mxu0 0.0
        %599 = vmatprep.subr.mxu0 0.0
        %600 = vmatpush1.msra.mxu0 0.0
        %601 = vmatprep.subr.mxu0 0.0
        %602 = vmatpush1.msra.mxu0 0.0
        %603 = vmatprep.subr.mxu0 0.0
        %604 = vmatpush1.msra.mxu0 0.0
        %605 = vmatprep.subr.mxu0 0.0
        %606 = vmatpush1.msra.mxu0 0.0
        %607 = vmatprep.subr.mxu0 0.0
        %608 = vmatpush1.msra.mxu0 0.0
        %609 = vmatprep.subr.mxu0 0.0
        %610 = vmatpush1.msra.mxu0 0.0
        %611 = vmatprep.subr.mxu0 0.0
        %612 = vmatpush1.msra.mxu0 0.0
        %613 = vmatprep.subr.mxu0 0.0
        %614 = vmatpush1.msra.mxu0 0.0
        %615 = vmatprep.subr.mxu0 0.0
        %616 = vmatpush1.msra.mxu0 0.0
        %617 = vmatprep.subr.mxu0 0.0
        %618 = vmatpush1.msra.mxu0 0.0
        %619 = vmatprep.subr.mxu0 0.0
        %620 = vmatpush1.msra.mxu0 0.0
        %621 = vmatprep.subr.mxu0 0.0
        %622 = vmatpush1.msra.mxu0 0.0
        %623 = vmatprep.subr.mxu0 0.0
        %624 = vmatpush1.msra.mxu0 0.0
        %625 = vmatprep.subr.mxu0 0.0
        %626 = vmatpush1.msra.mxu0 0.0
        %627 = vmatprep.subr.mxu0 0.0
        %628 = vmatpush1.msra.mxu0 0.0
        %629 = vmatprep.subr.mxu0 0.0
        %630 = vmatpush1.msra.mxu0 0.0
        %631 = vmatprep.subr.mxu0 0.0
        %632 = vmatpush1.msra.mxu0 0.0
        %633 = vmatprep.subr.mxu0 0.0
        %634 = vmatpush1.msra.mxu0 0.0
        %635 = vmatprep.subr.mxu0 0.0
        %636 = vmatpush1.msra.mxu0 0.0
        %637 = vmatprep.subr.mxu0 0.0
        %638 = vmatpush1.msra.mxu0 0.0
        %639 = vmatprep.mubr.f32.mxu0 0.0
        %v640 = vand.u32 %v224, 4294901760
        %641 = vmatmul.mubr.f32.gmra.mrb[0].mxu0 %v640
        %v642 = vpop.f32.mrb[0].mxu0
        %v643 = vadd.f32 %v558, %v642
        %v644 = vpop.f32.mrb[0].mxu0
        %645 = vmatprep.mubr.f32.mxu0 0.0
        %v646 = vand.u32 %v227, 4294901760
        %647 = vmatmul.mubr.f32.gmra.mrb[0].mxu0 %v646
        %v648 = vpop.f32.mrb[0].mxu0
        %v649 = vadd.f32 %v566, %v648
        %v650 = vpop.f32.mrb[0].mxu0
        %651 = vdwg.mxu0
        %652 = vmatprep.subr.mxu0 0.0
        %v653 = vand.u32 %v218, 4294901760
        %654 = vmatpush1.msra.mxu0 %v653
        %655 = vmatprep.subr.mxu0 0.0
        %v656 = vand.u32 %v219, 4294901760
        %657 = vmatpush1.msra.mxu0 %v656
        %658 = vmatprep.subr.mxu0 0.0
        %659 = vmatpush1.msra.mxu0 0.0
        %660 = vmatprep.subr.mxu0 0.0
        %661 = vmatpush1.msra.mxu0 0.0
        %662 = vmatprep.subr.mxu0 0.0
        %663 = vmatpush1.msra.mxu0 0.0
        %664 = vmatprep.subr.mxu0 0.0
        %665 = vmatpush1.msra.mxu0 0.0
        %666 = vmatprep.subr.mxu0 0.0
        %667 = vmatpush1.msra.mxu0 0.0
        %668 = vmatprep.subr.mxu0 0.0
        %669 = vmatpush1.msra.mxu0 0.0
        %670 = vmatprep.subr.mxu0 0.0
        %671 = vmatpush1.msra.mxu0 0.0
        %672 = vmatprep.subr.mxu0 0.0
        %673 = vmatpush1.msra.mxu0 0.0
        %674 = vmatprep.subr.mxu0 0.0
        %675 = vmatpush1.msra.mxu0 0.0
        %676 = vmatprep.subr.mxu0 0.0
        %677 = vmatpush1.msra.mxu0 0.0
        %678 = vmatprep.subr.mxu0 0.0
        %679 = vmatpush1.msra.mxu0 0.0
        %680 = vmatprep.subr.mxu0 0.0
        %681 = vmatpush1.msra.mxu0 0.0
        %682 = vmatprep.subr.mxu0 0.0
        %683 = vmatpush1.msra.mxu0 0.0
        %684 = vmatprep.subr.mxu0 0.0
        %685 = vmatpush1.msra.mxu0 0.0
        %686 = vmatprep.subr.mxu0 0.0
        %687 = vmatpush1.msra.mxu0 0.0
        %688 = vmatprep.subr.mxu0 0.0
        %689 = vmatpush1.msra.mxu0 0.0
        %690 = vmatprep.subr.mxu0 0.0
        %691 = vmatpush1.msra.mxu0 0.0
        %692 = vmatprep.subr.mxu0 0.0
        %693 = vmatpush1.msra.mxu0 0.0
        %694 = vmatprep.subr.mxu0 0.0
        %695 = vmatpush1.msra.mxu0 0.0
        %696 = vmatprep.subr.mxu0 0.0
        %697 = vmatpush1.msra.mxu0 0.0
        %698 = vmatprep.subr.mxu0 0.0
        %699 = vmatpush1.msra.mxu0 0.0
        %700 = vmatprep.subr.mxu0 0.0
        %701 = vmatpush1.msra.mxu0 0.0
        %702 = vmatprep.subr.mxu0 0.0
        %703 = vmatpush1.msra.mxu0 0.0
        %704 = vmatprep.subr.mxu0 0.0
        %705 = vmatpush1.msra.mxu0 0.0
        %706 = vmatprep.subr.mxu0 0.0
        %707 = vmatpush1.msra.mxu0 0.0
        %708 = vmatprep.subr.mxu0 0.0
        %709 = vmatpush1.msra.mxu0 0.0
        %710 = vmatprep.subr.mxu0 0.0
        %711 = vmatpush1.msra.mxu0 0.0
        %712 = vmatprep.subr.mxu0 0.0
        %713 = vmatpush1.msra.mxu0 0.0
        %714 = vmatprep.subr.mxu0 0.0
        %715 = vmatpush1.msra.mxu0 0.0
        %716 = vmatprep.subr.mxu0 0.0
        %717 = vmatpush1.msra.mxu0 0.0
        %718 = vmatprep.mubr.f32.mxu0 0.0
        %v719 = vand.u32 %v224, 4294901760
        %720 = vmatmul.mubr.f32.gmra.mrb[0].mxu0 %v719
        %v721 = vpop.f32.mrb[0].mxu0
        %v722 = vadd.f32 %v643, %v721
        %v723 = vpop.f32.mrb[0].mxu0
        %724 = vmatprep.mubr.f32.mxu0 0.0
        %v725 = vand.u32 %v227, 4294901760
        %726 = vmatmul.mubr.f32.gmra.mrb[0].mxu0 %v725
        %v727 = vpop.f32.mrb[0].mxu0
        %v728 = vadd.f32 %v649, %v727
        %v729 = vpop.f32.mrb[0].mxu0
        %730 = vdwg.mxu0
        %vm731 = vcmask 261120
        %732 = vst.msk [vmem:[%s215] sm:$0xff] %vm731, %v722
        %733 = vst.msk [vmem:[%s215 + $0x8] sm:$0xff] %vm731, %v728
        %736 = vrot.lane.b32.xlu0 %v722, 32
        %v737 = vpop.permute.xlu0 %736
        %738 = vrot.lane.b32.xlu0 %v728, 32
        %v739 = vpop.permute.xlu0 %738
        %vm742 = vcmask 523520
        %743 = vst.msk [vmem:[%s215] sm:$0xff] %vm742, %v737
        %744 = vst.msk [vmem:[%s215 + $0x8] sm:$0xff] %vm742, %v739
        %s745 = scalar_lea.vmem %s170, 16 [#allocation2]
        %v746 = vld [vmem:[%s745] sm:$0xff]
        %v747 = vld [vmem:[%s745 + $0x8] sm:$0xff]
        %v749 = vsel %vm222, %v746, 0
        %v752 = vsel %vm222, %v747, 0
        %754 = vmatprep.subr.mxu0 0.0
        %v755 = vand.u32 %v218, 4294901760
        %756 = vmatpush1.msra.mxu0 %v755
        %757 = vmatprep.subr.mxu0 0.0
        %v758 = vand.u32 %v219, 4294901760
        %759 = vmatpush1.msra.mxu0 %v758
        %760 = vmatprep.subr.mxu0 0.0
        %761 = vmatpush1.msra.mxu0 0.0
        %762 = vmatprep.subr.mxu0 0.0
        %763 = vmatpush1.msra.mxu0 0.0
        %764 = vmatprep.subr.mxu0 0.0
        %765 = vmatpush1.msra.mxu0 0.0
        %766 = vmatprep.subr.mxu0 0.0
        %767 = vmatpush1.msra.mxu0 0.0
        %768 = vmatprep.subr.mxu0 0.0
        %769 = vmatpush1.msra.mxu0 0.0
        %770 = vmatprep.subr.mxu0 0.0
        %771 = vmatpush1.msra.mxu0 0.0
        %772 = vmatprep.subr.mxu0 0.0
        %773 = vmatpush1.msra.mxu0 0.0
        %774 = vmatprep.subr.mxu0 0.0
        %775 = vmatpush1.msra.mxu0 0.0
        %776 = vmatprep.subr.mxu0 0.0
        %777 = vmatpush1.msra.mxu0 0.0
        %778 = vmatprep.subr.mxu0 0.0
        %779 = vmatpush1.msra.mxu0 0.0
        %780 = vmatprep.subr.mxu0 0.0
        %781 = vmatpush1.msra.mxu0 0.0
        %782 = vmatprep.subr.mxu0 0.0
        %783 = vmatpush1.msra.mxu0 0.0
        %784 = vmatprep.subr.mxu0 0.0
        %785 = vmatpush1.msra.mxu0 0.0
        %786 = vmatprep.subr.mxu0 0.0
        %787 = vmatpush1.msra.mxu0 0.0
        %788 = vmatprep.subr.mxu0 0.0
        %789 = vmatpush1.msra.mxu0 0.0
        %790 = vmatprep.subr.mxu0 0.0
        %791 = vmatpush1.msra.mxu0 0.0
        %792 = vmatprep.subr.mxu0 0.0
        %793 = vmatpush1.msra.mxu0 0.0
        %794 = vmatprep.subr.mxu0 0.0
        %795 = vmatpush1.msra.mxu0 0.0
        %796 = vmatprep.subr.mxu0 0.0
        %797 = vmatpush1.msra.mxu0 0.0
        %798 = vmatprep.subr.mxu0 0.0
        %799 = vmatpush1.msra.mxu0 0.0
        %800 = vmatprep.subr.mxu0 0.0
        %801 = vmatpush1.msra.mxu0 0.0
        %802 = vmatprep.subr.mxu0 0.0
        %803 = vmatpush1.msra.mxu0 0.0
        %804 = vmatprep.subr.mxu0 0.0
        %805 = vmatpush1.msra.mxu0 0.0
        %806 = vmatprep.subr.mxu0 0.0
        %807 = vmatpush1.msra.mxu0 0.0
        %808 = vmatprep.subr.mxu0 0.0
        %809 = vmatpush1.msra.mxu0 0.0
        %810 = vmatprep.subr.mxu0 0.0
        %811 = vmatpush1.msra.mxu0 0.0
        %812 = vmatprep.subr.mxu0 0.0
        %813 = vmatpush1.msra.mxu0 0.0
        %814 = vmatprep.subr.mxu0 0.0
        %815 = vmatpush1.msra.mxu0 0.0
        %816 = vmatprep.subr.mxu0 0.0
        %817 = vmatpush1.msra.mxu0 0.0
        %818 = vmatprep.subr.mxu0 0.0
        %819 = vmatpush1.msra.mxu0 0.0
        %820 = vmatprep.mubr.f32.mxu0 0.0
        %v821 = vand.u32 %v749, 4294901760
        %v822 = vsub.f32 %v749, %v821
        %v823 = vand.u32 %v822, 4294901760
        %v824 = vsub.f32 %v822, %v823
        %v825 = vand.u32 %v824, 4294901760
        %826 = vmatmul.mubr.f32.gmra.mrb[0].mxu0 %v825
        %v827 = vpop.f32.mrb[0].mxu0
        %v828 = vadd.f32 0.0, %v827
        %v829 = vpop.f32.mrb[0].mxu0
        %830 = vmatprep.mubr.f32.mxu0 0.0
        %v831 = vand.u32 %v752, 4294901760
        %v832 = vsub.f32 %v752, %v831
        %v833 = vand.u32 %v832, 4294901760
        %v834 = vsub.f32 %v832, %v833
        %v835 = vand.u32 %v834, 4294901760
        %836 = vmatmul.mubr.f32.gmra.mrb[0].mxu0 %v835
        %v837 = vpop.f32.mrb[0].mxu0
        %v838 = vadd.f32 0.0, %v837
        %v839 = vpop.f32.mrb[0].mxu0
        %840 = vdwg.mxu0
        %841 = vmatprep.subr.mxu0 0.0
        %v842 = vand.u32 %v218, 4294901760
        %v843 = vsub.f32 %v218, %v842
        %v844 = vand.u32 %v843, 4294901760
        %v845 = vsub.f32 %v843, %v844
        %v846 = vand.u32 %v845, 4294901760
        %847 = vmatpush1.msra.mxu0 %v846
        %848 = vmatprep.subr.mxu0 0.0
        %v849 = vand.u32 %v219, 4294901760
        %v850 = vsub.f32 %v219, %v849
        %v851 = vand.u32 %v850, 4294901760
        %v852 = vsub.f32 %v850, %v851
        %v853 = vand.u32 %v852, 4294901760
        %854 = vmatpush1.msra.mxu0 %v853
        %855 = vmatprep.subr.mxu0 0.0
        %856 = vmatpush1.msra.mxu0 0.0
        %857 = vmatprep.subr.mxu0 0.0
        %858 = vmatpush1.msra.mxu0 0.0
        %859 = vmatprep.subr.mxu0 0.0
        %860 = vmatpush1.msra.mxu0 0.0
        %861 = vmatprep.subr.mxu0 0.0
        %862 = vmatpush1.msra.mxu0 0.0
        %863 = vmatprep.subr.mxu0 0.0
        %864 = vmatpush1.msra.mxu0 0.0
        %865 = vmatprep.subr.mxu0 0.0
        %866 = vmatpush1.msra.mxu0 0.0
        %867 = vmatprep.subr.mxu0 0.0
        %868 = vmatpush1.msra.mxu0 0.0
        %869 = vmatprep.subr.mxu0 0.0
        %870 = vmatpush1.msra.mxu0 0.0
        %871 = vmatprep.subr.mxu0 0.0
        %872 = vmatpush1.msra.mxu0 0.0
        %873 = vmatprep.subr.mxu0 0.0
        %874 = vmatpush1.msra.mxu0 0.0
        %875 = vmatprep.subr.mxu0 0.0
        %876 = vmatpush1.msra.mxu0 0.0
        %877 = vmatprep.subr.mxu0 0.0
        %878 = vmatpush1.msra.mxu0 0.0
        %879 = vmatprep.subr.mxu0 0.0
        %880 = vmatpush1.msra.mxu0 0.0
        %881 = vmatprep.subr.mxu0 0.0
        %882 = vmatpush1.msra.mxu0 0.0
        %883 = vmatprep.subr.mxu0 0.0
        %884 = vmatpush1.msra.mxu0 0.0
        %885 = vmatprep.subr.mxu0 0.0
        %886 = vmatpush1.msra.mxu0 0.0
        %887 = vmatprep.subr.mxu0 0.0
        %888 = vmatpush1.msra.mxu0 0.0
        %889 = vmatprep.subr.mxu0 0.0
        %890 = vmatpush1.msra.mxu0 0.0
        %891 = vmatprep.subr.mxu0 0.0
        %892 = vmatpush1.msra.mxu0 0.0
        %893 = vmatprep.subr.mxu0 0.0
        %894 = vmatpush1.msra.mxu0 0.0
        %895 = vmatprep.subr.mxu0 0.0
        %896 = vmatpush1.msra.mxu0 0.0
        %897 = vmatprep.subr.mxu0 0.0
        %898 = vmatpush1.msra.mxu0 0.0
        %899 = vmatprep.subr.mxu0 0.0
        %900 = vmatpush1.msra.mxu0 0.0
        %901 = vmatprep.subr.mxu0 0.0
        %902 = vmatpush1.msra.mxu0 0.0
        %903 = vmatprep.subr.mxu0 0.0
        %904 = vmatpush1.msra.mxu0 0.0
        %905 = vmatprep.subr.mxu0 0.0
        %906 = vmatpush1.msra.mxu0 0.0
        %907 = vmatprep.subr.mxu0 0.0
        %908 = vmatpush1.msra.mxu0 0.0
        %909 = vmatprep.subr.mxu0 0.0
        %910 = vmatpush1.msra.mxu0 0.0
        %911 = vmatprep.subr.mxu0 0.0
        %912 = vmatpush1.msra.mxu0 0.0
        %913 = vmatprep.subr.mxu0 0.0
        %914 = vmatpush1.msra.mxu0 0.0
        %915 = vmatprep.mubr.f32.mxu0 0.0
        %v916 = vand.u32 %v749, 4294901760
        %917 = vmatmul.mubr.f32.gmra.mrb[0].mxu0 %v916
        %v918 = vpop.f32.mrb[0].mxu0
        %v919 = vadd.f32 %v828, %v918
        %v920 = vpop.f32.mrb[0].mxu0
        %921 = vmatprep.mubr.f32.mxu0 0.0
        %v922 = vand.u32 %v752, 4294901760
        %923 = vmatmul.mubr.f32.gmra.mrb[0].mxu0 %v922
        %v924 = vpop.f32.mrb[0].mxu0
        %v925 = vadd.f32 %v838, %v924
        %v926 = vpop.f32.mrb[0].mxu0
        %927 = vdwg.mxu0
        %928 = vmatprep.subr.mxu0 0.0
        %v929 = vand.u32 %v218, 4294901760
        %v930 = vsub.f32 %v218, %v929
        %931 = vmatpush1.msra.mxu0 %v930
        %932 = vmatprep.subr.mxu0 0.0
        %v933 = vand.u32 %v219, 4294901760
        %v934 = vsub.f32 %v219, %v933
        %935 = vmatpush1.msra.mxu0 %v934
        %936 = vmatprep.subr.mxu0 0.0
        %937 = vmatpush1.msra.mxu0 0.0
        %938 = vmatprep.subr.mxu0 0.0
        %939 = vmatpush1.msra.mxu0 0.0
        %940 = vmatprep.subr.mxu0 0.0
        %941 = vmatpush1.msra.mxu0 0.0
        %942 = vmatprep.subr.mxu0 0.0
        %943 = vmatpush1.msra.mxu0 0.0
        %944 = vmatprep.subr.mxu0 0.0
        %945 = vmatpush1.msra.mxu0 0.0
        %946 = vmatprep.subr.mxu0 0.0
        %947 = vmatpush1.msra.mxu0 0.0
        %948 = vmatprep.subr.mxu0 0.0
        %949 = vmatpush1.msra.mxu0 0.0
        %950 = vmatprep.subr.mxu0 0.0
        %951 = vmatpush1.msra.mxu0 0.0
        %952 = vmatprep.subr.mxu0 0.0
        %953 = vmatpush1.msra.mxu0 0.0
        %954 = vmatprep.subr.mxu0 0.0
        %955 = vmatpush1.msra.mxu0 0.0
        %956 = vmatprep.subr.mxu0 0.0
        %957 = vmatpush1.msra.mxu0 0.0
        %958 = vmatprep.subr.mxu0 0.0
        %959 = vmatpush1.msra.mxu0 0.0
        %960 = vmatprep.subr.mxu0 0.0
        %961 = vmatpush1.msra.mxu0 0.0
        %962 = vmatprep.subr.mxu0 0.0
        %963 = vmatpush1.msra.mxu0 0.0
        %964 = vmatprep.subr.mxu0 0.0
        %965 = vmatpush1.msra.mxu0 0.0
        %966 = vmatprep.subr.mxu0 0.0
        %967 = vmatpush1.msra.mxu0 0.0
        %968 = vmatprep.subr.mxu0 0.0
        %969 = vmatpush1.msra.mxu0 0.0
        %970 = vmatprep.subr.mxu0 0.0
        %971 = vmatpush1.msra.mxu0 0.0
        %972 = vmatprep.subr.mxu0 0.0
        %973 = vmatpush1.msra.mxu0 0.0
        %974 = vmatprep.subr.mxu0 0.0
        %975 = vmatpush1.msra.mxu0 0.0
        %976 = vmatprep.subr.mxu0 0.0
        %977 = vmatpush1.msra.mxu0 0.0
        %978 = vmatprep.subr.mxu0 0.0
        %979 = vmatpush1.msra.mxu0 0.0
        %980 = vmatprep.subr.mxu0 0.0
        %981 = vmatpush1.msra.mxu0 0.0
        %982 = vmatprep.subr.mxu0 0.0
        %983 = vmatpush1.msra.mxu0 0.0
        %984 = vmatprep.subr.mxu0 0.0
        %985 = vmatpush1.msra.mxu0 0.0
        %986 = vmatprep.subr.mxu0 0.0
        %987 = vmatpush1.msra.mxu0 0.0
        %988 = vmatprep.subr.mxu0 0.0
        %989 = vmatpush1.msra.mxu0 0.0
        %990 = vmatprep.subr.mxu0 0.0
        %991 = vmatpush1.msra.mxu0 0.0
        %992 = vmatprep.subr.mxu0 0.0
        %993 = vmatpush1.msra.mxu0 0.0
        %994 = vmatprep.subr.mxu0 0.0
        %995 = vmatpush1.msra.mxu0 0.0
        %996 = vmatprep.mubr.f32.mxu0 0.0
        %v997 = vand.u32 %v749, 4294901760
        %v998 = vsub.f32 %v749, %v997
        %999 = vmatmul.mubr.f32.gmra.mrb[0].mxu0 %v998
        %v1000 = vpop.f32.mrb[0].mxu0
        %v1001 = vadd.f32 %v919, %v1000
        %v1002 = vpop.f32.mrb[0].mxu0
        %1003 = vmatprep.mubr.f32.mxu0 0.0
        %v1004 = vand.u32 %v752, 4294901760
        %v1005 = vsub.f32 %v752, %v1004
        %1006 = vmatmul.mubr.f32.gmra.mrb[0].mxu0 %v1005
        %v1007 = vpop.f32.mrb[0].mxu0
        %v1008 = vadd.f32 %v925, %v1007
        %v1009 = vpop.f32.mrb[0].mxu0
        %1010 = vdwg.mxu0
        %1011 = vmatprep.subr.mxu0 0.0
        %v1012 = vand.u32 %v218, 4294901760
        %1013 = vmatpush1.msra.mxu0 %v1012
        %1014 = vmatprep.subr.mxu0 0.0
        %v1015 = vand.u32 %v219, 4294901760
        %1016 = vmatpush1.msra.mxu0 %v1015
        %1017 = vmatprep.subr.mxu0 0.0
        %1018 = vmatpush1.msra.mxu0 0.0
        %1019 = vmatprep.subr.mxu0 0.0
        %1020 = vmatpush1.msra.mxu0 0.0
        %1021 = vmatprep.subr.mxu0 0.0
        %1022 = vmatpush1.msra.mxu0 0.0
        %1023 = vmatprep.subr.mxu0 0.0
        %1024 = vmatpush1.msra.mxu0 0.0
        %1025 = vmatprep.subr.mxu0 0.0
        %1026 = vmatpush1.msra.mxu0 0.0
        %1027 = vmatprep.subr.mxu0 0.0
        %1028 = vmatpush1.msra.mxu0 0.0
        %1029 = vmatprep.subr.mxu0 0.0
        %1030 = vmatpush1.msra.mxu0 0.0
        %1031 = vmatprep.subr.mxu0 0.0
        %1032 = vmatpush1.msra.mxu0 0.0
        %1033 = vmatprep.subr.mxu0 0.0
        %1034 = vmatpush1.msra.mxu0 0.0
        %1035 = vmatprep.subr.mxu0 0.0
        %1036 = vmatpush1.msra.mxu0 0.0
        %1037 = vmatprep.subr.mxu0 0.0
        %1038 = vmatpush1.msra.mxu0 0.0
        %1039 = vmatprep.subr.mxu0 0.0
        %1040 = vmatpush1.msra.mxu0 0.0
        %1041 = vmatprep.subr.mxu0 0.0
        %1042 = vmatpush1.msra.mxu0 0.0
        %1043 = vmatprep.subr.mxu0 0.0
        %1044 = vmatpush1.msra.mxu0 0.0
        %1045 = vmatprep.subr.mxu0 0.0
        %1046 = vmatpush1.msra.mxu0 0.0
        %1047 = vmatprep.subr.mxu0 0.0
        %1048 = vmatpush1.msra.mxu0 0.0
        %1049 = vmatprep.subr.mxu0 0.0
        %1050 = vmatpush1.msra.mxu0 0.0
        %1051 = vmatprep.subr.mxu0 0.0
        %1052 = vmatpush1.msra.mxu0 0.0
        %1053 = vmatprep.subr.mxu0 0.0
        %1054 = vmatpush1.msra.mxu0 0.0
        %1055 = vmatprep.subr.mxu0 0.0
        %1056 = vmatpush1.msra.mxu0 0.0
        %1057 = vmatprep.subr.mxu0 0.0
        %1058 = vmatpush1.msra.mxu0 0.0
        %1059 = vmatprep.subr.mxu0 0.0
        %1060 = vmatpush1.msra.mxu0 0.0
        %1061 = vmatprep.subr.mxu0 0.0
        %1062 = vmatpush1.msra.mxu0 0.0
        %1063 = vmatprep.subr.mxu0 0.0
        %1064 = vmatpush1.msra.mxu0 0.0
        %1065 = vmatprep.subr.mxu0 0.0
        %1066 = vmatpush1.msra.mxu0 0.0
        %1067 = vmatprep.subr.mxu0 0.0
        %1068 = vmatpush1.msra.mxu0 0.0
        %1069 = vmatprep.subr.mxu0 0.0
        %1070 = vmatpush1.msra.mxu0 0.0
        %1071 = vmatprep.subr.mxu0 0.0
        %1072 = vmatpush1.msra.mxu0 0.0
        %1073 = vmatprep.subr.mxu0 0.0
        %1074 = vmatpush1.msra.mxu0 0.0
        %1075 = vmatprep.subr.mxu0 0.0
        %1076 = vmatpush1.msra.mxu0 0.0
        %1077 = vmatprep.mubr.f32.mxu0 0.0
        %v1078 = vand.u32 %v749, 4294901760
        %v1079 = vsub.f32 %v749, %v1078
        %v1080 = vand.u32 %v1079, 4294901760
        %1081 = vmatmul.mubr.f32.gmra.mrb[0].mxu0 %v1080
        %v1082 = vpop.f32.mrb[0].mxu0
        %v1083 = vadd.f32 %v1001, %v1082
        %v1084 = vpop.f32.mrb[0].mxu0
        %1085 = vmatprep.mubr.f32.mxu0 0.0
        %v1086 = vand.u32 %v752, 4294901760
        %v1087 = vsub.f32 %v752, %v1086
        %v1088 = vand.u32 %v1087, 4294901760
        %1089 = vmatmul.mubr.f32.gmra.mrb[0].mxu0 %v1088
        %v1090 = vpop.f32.mrb[0].mxu0
        %v1091 = vadd.f32 %v1008, %v1090
        %v1092 = vpop.f32.mrb[0].mxu0
        %1093 = vdwg.mxu0
        %1094 = vmatprep.subr.mxu0 0.0
        %v1095 = vand.u32 %v218, 4294901760
        %v1096 = vsub.f32 %v218, %v1095
        %v1097 = vand.u32 %v1096, 4294901760
        %1098 = vmatpush1.msra.mxu0 %v1097
        %1099 = vmatprep.subr.mxu0 0.0
        %v1100 = vand.u32 %v219, 4294901760
        %v1101 = vsub.f32 %v219, %v1100
        %v1102 = vand.u32 %v1101, 4294901760
        %1103 = vmatpush1.msra.mxu0 %v1102
        %1104 = vmatprep.subr.mxu0 0.0
        %1105 = vmatpush1.msra.mxu0 0.0
        %1106 = vmatprep.subr.mxu0 0.0
        %1107 = vmatpush1.msra.mxu0 0.0
        %1108 = vmatprep.subr.mxu0 0.0
        %1109 = vmatpush1.msra.mxu0 0.0
        %1110 = vmatprep.subr.mxu0 0.0
        %1111 = vmatpush1.msra.mxu0 0.0
        %1112 = vmatprep.subr.mxu0 0.0
        %1113 = vmatpush1.msra.mxu0 0.0
        %1114 = vmatprep.subr.mxu0 0.0
        %1115 = vmatpush1.msra.mxu0 0.0
        %1116 = vmatprep.subr.mxu0 0.0
        %1117 = vmatpush1.msra.mxu0 0.0
        %1118 = vmatprep.subr.mxu0 0.0
        %1119 = vmatpush1.msra.mxu0 0.0
        %1120 = vmatprep.subr.mxu0 0.0
        %1121 = vmatpush1.msra.mxu0 0.0
        %1122 = vmatprep.subr.mxu0 0.0
        %1123 = vmatpush1.msra.mxu0 0.0
        %1124 = vmatprep.subr.mxu0 0.0
        %1125 = vmatpush1.msra.mxu0 0.0
        %1126 = vmatprep.subr.mxu0 0.0
        %1127 = vmatpush1.msra.mxu0 0.0
        %1128 = vmatprep.subr.mxu0 0.0
        %1129 = vmatpush1.msra.mxu0 0.0
        %1130 = vmatprep.subr.mxu0 0.0
        %1131 = vmatpush1.msra.mxu0 0.0
        %1132 = vmatprep.subr.mxu0 0.0
        %1133 = vmatpush1.msra.mxu0 0.0
        %1134 = vmatprep.subr.mxu0 0.0
        %1135 = vmatpush1.msra.mxu0 0.0
        %1136 = vmatprep.subr.mxu0 0.0
        %1137 = vmatpush1.msra.mxu0 0.0
        %1138 = vmatprep.subr.mxu0 0.0
        %1139 = vmatpush1.msra.mxu0 0.0
        %1140 = vmatprep.subr.mxu0 0.0
        %1141 = vmatpush1.msra.mxu0 0.0
        %1142 = vmatprep.subr.mxu0 0.0
        %1143 = vmatpush1.msra.mxu0 0.0
        %1144 = vmatprep.subr.mxu0 0.0
        %1145 = vmatpush1.msra.mxu0 0.0
        %1146 = vmatprep.subr.mxu0 0.0
        %1147 = vmatpush1.msra.mxu0 0.0
        %1148 = vmatprep.subr.mxu0 0.0
        %1149 = vmatpush1.msra.mxu0 0.0
        %1150 = vmatprep.subr.mxu0 0.0
        %1151 = vmatpush1.msra.mxu0 0.0
        %1152 = vmatprep.subr.mxu0 0.0
        %1153 = vmatpush1.msra.mxu0 0.0
        %1154 = vmatprep.subr.mxu0 0.0
        %1155 = vmatpush1.msra.mxu0 0.0
        %1156 = vmatprep.subr.mxu0 0.0
        %1157 = vmatpush1.msra.mxu0 0.0
        %1158 = vmatprep.subr.mxu0 0.0
        %1159 = vmatpush1.msra.mxu0 0.0
        %1160 = vmatprep.subr.mxu0 0.0
        %1161 = vmatpush1.msra.mxu0 0.0
        %1162 = vmatprep.subr.mxu0 0.0
        %1163 = vmatpush1.msra.mxu0 0.0
        %1164 = vmatprep.mubr.f32.mxu0 0.0
        %v1165 = vand.u32 %v749, 4294901760
        %1166 = vmatmul.mubr.f32.gmra.mrb[0].mxu0 %v1165
        %v1167 = vpop.f32.mrb[0].mxu0
        %v1168 = vadd.f32 %v1083, %v1167
        %v1169 = vpop.f32.mrb[0].mxu0
        %1170 = vmatprep.mubr.f32.mxu0 0.0
        %v1171 = vand.u32 %v752, 4294901760
        %1172 = vmatmul.mubr.f32.gmra.mrb[0].mxu0 %v1171
        %v1173 = vpop.f32.mrb[0].mxu0
        %v1174 = vadd.f32 %v1091, %v1173
        %v1175 = vpop.f32.mrb[0].mxu0
        %1176 = vdwg.mxu0
        %1177 = vmatprep.subr.mxu0 0.0
        %v1178 = vand.u32 %v218, 4294901760
        %1179 = vmatpush1.msra.mxu0 %v1178
        %1180 = vmatprep.subr.mxu0 0.0
        %v1181 = vand.u32 %v219, 4294901760
        %1182 = vmatpush1.msra.mxu0 %v1181
        %1183 = vmatprep.subr.mxu0 0.0
        %1184 = vmatpush1.msra.mxu0 0.0
        %1185 = vmatprep.subr.mxu0 0.0
        %1186 = vmatpush1.msra.mxu0 0.0
        %1187 = vmatprep.subr.mxu0 0.0
        %1188 = vmatpush1.msra.mxu0 0.0
        %1189 = vmatprep.subr.mxu0 0.0
        %1190 = vmatpush1.msra.mxu0 0.0
        %1191 = vmatprep.subr.mxu0 0.0
        %1192 = vmatpush1.msra.mxu0 0.0
        %1193 = vmatprep.subr.mxu0 0.0
        %1194 = vmatpush1.msra.mxu0 0.0
        %1195 = vmatprep.subr.mxu0 0.0
        %1196 = vmatpush1.msra.mxu0 0.0
        %1197 = vmatprep.subr.mxu0 0.0
        %1198 = vmatpush1.msra.mxu0 0.0
        %1199 = vmatprep.subr.mxu0 0.0
        %1200 = vmatpush1.msra.mxu0 0.0
        %1201 = vmatprep.subr.mxu0 0.0
        %1202 = vmatpush1.msra.mxu0 0.0
        %1203 = vmatprep.subr.mxu0 0.0
        %1204 = vmatpush1.msra.mxu0 0.0
        %1205 = vmatprep.subr.mxu0 0.0
        %1206 = vmatpush1.msra.mxu0 0.0
        %1207 = vmatprep.subr.mxu0 0.0
        %1208 = vmatpush1.msra.mxu0 0.0
        %1209 = vmatprep.subr.mxu0 0.0
        %1210 = vmatpush1.msra.mxu0 0.0
        %1211 = vmatprep.subr.mxu0 0.0
        %1212 = vmatpush1.msra.mxu0 0.0
        %1213 = vmatprep.subr.mxu0 0.0
        %1214 = vmatpush1.msra.mxu0 0.0
        %1215 = vmatprep.subr.mxu0 0.0
        %1216 = vmatpush1.msra.mxu0 0.0
        %1217 = vmatprep.subr.mxu0 0.0
        %1218 = vmatpush1.msra.mxu0 0.0
        %1219 = vmatprep.subr.mxu0 0.0
        %1220 = vmatpush1.msra.mxu0 0.0
        %1221 = vmatprep.subr.mxu0 0.0
        %1222 = vmatpush1.msra.mxu0 0.0
        %1223 = vmatprep.subr.mxu0 0.0
        %1224 = vmatpush1.msra.mxu0 0.0
        %1225 = vmatprep.subr.mxu0 0.0
        %1226 = vmatpush1.msra.mxu0 0.0
        %1227 = vmatprep.subr.mxu0 0.0
        %1228 = vmatpush1.msra.mxu0 0.0
        %1229 = vmatprep.subr.mxu0 0.0
        %1230 = vmatpush1.msra.mxu0 0.0
        %1231 = vmatprep.subr.mxu0 0.0
        %1232 = vmatpush1.msra.mxu0 0.0
        %1233 = vmatprep.subr.mxu0 0.0
        %1234 = vmatpush1.msra.mxu0 0.0
        %1235 = vmatprep.subr.mxu0 0.0
        %1236 = vmatpush1.msra.mxu0 0.0
        %1237 = vmatprep.subr.mxu0 0.0
        %1238 = vmatpush1.msra.mxu0 0.0
        %1239 = vmatprep.subr.mxu0 0.0
        %1240 = vmatpush1.msra.mxu0 0.0
        %1241 = vmatprep.subr.mxu0 0.0
        %1242 = vmatpush1.msra.mxu0 0.0
        %1243 = vmatprep.mubr.f32.mxu0 0.0
        %v1244 = vand.u32 %v749, 4294901760
        %1245 = vmatmul.mubr.f32.gmra.mrb[0].mxu0 %v1244
        %v1246 = vpop.f32.mrb[0].mxu0
        %v1247 = vadd.f32 %v1168, %v1246
        %v1248 = vpop.f32.mrb[0].mxu0
        %1249 = vmatprep.mubr.f32.mxu0 0.0
        %v1250 = vand.u32 %v752, 4294901760
        %1251 = vmatmul.mubr.f32.gmra.mrb[0].mxu0 %v1250
        %v1252 = vpop.f32.mrb[0].mxu0
        %v1253 = vadd.f32 %v1174, %v1252
        %v1254 = vpop.f32.mrb[0].mxu0
        %1255 = vdwg.mxu0
        %s1256 = scalar_lea.vmem %s215, 16
        %1257 = vst.msk [vmem:[%s1256] sm:$0xff] %vm731, %v1247
        %1258 = vst.msk [vmem:[%s1256 + $0x8] sm:$0xff] %vm731, %v1253
        %1261 = vrot.lane.b32.xlu0 %v1247, 32
        %v1262 = vpop.permute.xlu0 %1261
        %1263 = vrot.lane.b32.xlu0 %v1253, 32
        %v1264 = vpop.permute.xlu0 %1263
        %1267 = vst.msk [vmem:[%s1256] sm:$0xff] %vm742, %v1262
        %1268 = vst.msk [vmem:[%s1256 + $0x8] sm:$0xff] %vm742, %v1264
        %s1269 = scalar_lea.vmem %s170, 32 [#allocation2]
        %v1270 = vld [vmem:[%s1269] sm:$0xff]
        %v1271 = vld [vmem:[%s1269 + $0x8] sm:$0xff]
        %v1273 = vsel %vm222, %v1270, 0
        %v1276 = vsel %vm222, %v1271, 0
        %1278 = vmatprep.subr.mxu0 0.0
        %v1279 = vand.u32 %v218, 4294901760
        %1280 = vmatpush1.msra.mxu0 %v1279
        %1281 = vmatprep.subr.mxu0 0.0
        %v1282 = vand.u32 %v219, 4294901760
        %1283 = vmatpush1.msra.mxu0 %v1282
        %1284 = vmatprep.subr.mxu0 0.0
        %1285 = vmatpush1.msra.mxu0 0.0
        %1286 = vmatprep.subr.mxu0 0.0
        %1287 = vmatpush1.msra.mxu0 0.0
        %1288 = vmatprep.subr.mxu0 0.0
        %1289 = vmatpush1.msra.mxu0 0.0
        %1290 = vmatprep.subr.mxu0 0.0
        %1291 = vmatpush1.msra.mxu0 0.0
        %1292 = vmatprep.subr.mxu0 0.0
        %1293 = vmatpush1.msra.mxu0 0.0
        %1294 = vmatprep.subr.mxu0 0.0
        %1295 = vmatpush1.msra.mxu0 0.0
        %1296 = vmatprep.subr.mxu0 0.0
        %1297 = vmatpush1.msra.mxu0 0.0
        %1298 = vmatprep.subr.mxu0 0.0
        %1299 = vmatpush1.msra.mxu0 0.0
        %1300 = vmatprep.subr.mxu0 0.0
        %1301 = vmatpush1.msra.mxu0 0.0
        %1302 = vmatprep.subr.mxu0 0.0
        %1303 = vmatpush1.msra.mxu0 0.0
        %1304 = vmatprep.subr.mxu0 0.0
        %1305 = vmatpush1.msra.mxu0 0.0
        %1306 = vmatprep.subr.mxu0 0.0
        %1307 = vmatpush1.msra.mxu0 0.0
        %1308 = vmatprep.subr.mxu0 0.0
        %1309 = vmatpush1.msra.mxu0 0.0
        %1310 = vmatprep.subr.mxu0 0.0
        %1311 = vmatpush1.msra.mxu0 0.0
        %1312 = vmatprep.subr.mxu0 0.0
        %1313 = vmatpush1.msra.mxu0 0.0
        %1314 = vmatprep.subr.mxu0 0.0
        %1315 = vmatpush1.msra.mxu0 0.0
        %1316 = vmatprep.subr.mxu0 0.0
        %1317 = vmatpush1.msra.mxu0 0.0
        %1318 = vmatprep.subr.mxu0 0.0
        %1319 = vmatpush1.msra.mxu0 0.0
        %1320 = vmatprep.subr.mxu0 0.0
        %1321 = vmatpush1.msra.mxu0 0.0
        %1322 = vmatprep.subr.mxu0 0.0
        %1323 = vmatpush1.msra.mxu0 0.0
        %1324 = vmatprep.subr.mxu0 0.0
        %1325 = vmatpush1.msra.mxu0 0.0
        %1326 = vmatprep.subr.mxu0 0.0
        %1327 = vmatpush1.msra.mxu0 0.0
        %1328 = vmatprep.subr.mxu0 0.0
        %1329 = vmatpush1.msra.mxu0 0.0
        %1330 = vmatprep.subr.mxu0 0.0
        %1331 = vmatpush1.msra.mxu0 0.0
        %1332 = vmatprep.subr.mxu0 0.0
        %1333 = vmatpush1.msra.mxu0 0.0
        %1334 = vmatprep.subr.mxu0 0.0
        %1335 = vmatpush1.msra.mxu0 0.0
        %1336 = vmatprep.subr.mxu0 0.0
        %1337 = vmatpush1.msra.mxu0 0.0
        %1338 = vmatprep.subr.mxu0 0.0
        %1339 = vmatpush1.msra.mxu0 0.0
        %1340 = vmatprep.subr.mxu0 0.0
        %1341 = vmatpush1.msra.mxu0 0.0
        %1342 = vmatprep.subr.mxu0 0.0
        %1343 = vmatpush1.msra.mxu0 0.0
        %1344 = vmatprep.mubr.f32.mxu0 0.0
        %v1345 = vand.u32 %v1273, 4294901760
        %v1346 = vsub.f32 %v1273, %v1345
        %v1347 = vand.u32 %v1346, 4294901760
        %v1348 = vsub.f32 %v1346, %v1347
        %v1349 = vand.u32 %v1348, 4294901760
        %1350 = vmatmul.mubr.f32.gmra.mrb[0].mxu0 %v1349
        %v1351 = vpop.f32.mrb[0].mxu0
        %v1352 = vadd.f32 0.0, %v1351
        %v1353 = vpop.f32.mrb[0].mxu0
        %1354 = vmatprep.mubr.f32.mxu0 0.0
        %v1355 = vand.u32 %v1276, 4294901760
        %v1356 = vsub.f32 %v1276, %v1355
        %v1357 = vand.u32 %v1356, 4294901760
        %v1358 = vsub.f32 %v1356, %v1357
        %v1359 = vand.u32 %v1358, 4294901760
        %1360 = vmatmul.mubr.f32.gmra.mrb[0].mxu0 %v1359
        %v1361 = vpop.f32.mrb[0].mxu0
        %v1362 = vadd.f32 0.0, %v1361
        %v1363 = vpop.f32.mrb[0].mxu0
        %1364 = vdwg.mxu0
        %1365 = vmatprep.subr.mxu0 0.0
        %v1366 = vand.u32 %v218, 4294901760
        %v1367 = vsub.f32 %v218, %v1366
        %v1368 = vand.u32 %v1367, 4294901760
        %v1369 = vsub.f32 %v1367, %v1368
        %v1370 = vand.u32 %v1369, 4294901760
        %1371 = vmatpush1.msra.mxu0 %v1370
        %1372 = vmatprep.subr.mxu0 0.0
        %v1373 = vand.u32 %v219, 4294901760
        %v1374 = vsub.f32 %v219, %v1373
        %v1375 = vand.u32 %v1374, 4294901760
        %v1376 = vsub.f32 %v1374, %v1375
        %v1377 = vand.u32 %v1376, 4294901760
        %1378 = vmatpush1.msra.mxu0 %v1377
        %1379 = vmatprep.subr.mxu0 0.0
        %1380 = vmatpush1.msra.mxu0 0.0
        %1381 = vmatprep.subr.mxu0 0.0
        %1382 = vmatpush1.msra.mxu0 0.0
        %1383 = vmatprep.subr.mxu0 0.0
        %1384 = vmatpush1.msra.mxu0 0.0
        %1385 = vmatprep.subr.mxu0 0.0
        %1386 = vmatpush1.msra.mxu0 0.0
        %1387 = vmatprep.subr.mxu0 0.0
        %1388 = vmatpush1.msra.mxu0 0.0
        %1389 = vmatprep.subr.mxu0 0.0
        %1390 = vmatpush1.msra.mxu0 0.0
        %1391 = vmatprep.subr.mxu0 0.0
        %1392 = vmatpush1.msra.mxu0 0.0
        %1393 = vmatprep.subr.mxu0 0.0
        %1394 = vmatpush1.msra.mxu0 0.0
        %1395 = vmatprep.subr.mxu0 0.0
        %1396 = vmatpush1.msra.mxu0 0.0
        %1397 = vmatprep.subr.mxu0 0.0
        %1398 = vmatpush1.msra.mxu0 0.0
        %1399 = vmatprep.subr.mxu0 0.0
        %1400 = vmatpush1.msra.mxu0 0.0
        %1401 = vmatprep.subr.mxu0 0.0
        %1402 = vmatpush1.msra.mxu0 0.0
        %1403 = vmatprep.subr.mxu0 0.0
        %1404 = vmatpush1.msra.mxu0 0.0
        %1405 = vmatprep.subr.mxu0 0.0
        %1406 = vmatpush1.msra.mxu0 0.0
        %1407 = vmatprep.subr.mxu0 0.0
        %1408 = vmatpush1.msra.mxu0 0.0
        %1409 = vmatprep.subr.mxu0 0.0
        %1410 = vmatpush1.msra.mxu0 0.0
        %1411 = vmatprep.subr.mxu0 0.0
        %1412 = vmatpush1.msra.mxu0 0.0
        %1413 = vmatprep.subr.mxu0 0.0
        %1414 = vmatpush1.msra.mxu0 0.0
        %1415 = vmatprep.subr.mxu0 0.0
        %1416 = vmatpush1.msra.mxu0 0.0
        %1417 = vmatprep.subr.mxu0 0.0
        %1418 = vmatpush1.msra.mxu0 0.0
        %1419 = vmatprep.subr.mxu0 0.0
        %1420 = vmatpush1.msra.mxu0 0.0
        %1421 = vmatprep.subr.mxu0 0.0
        %1422 = vmatpush1.msra.mxu0 0.0
        %1423 = vmatprep.subr.mxu0 0.0
        %1424 = vmatpush1.msra.mxu0 0.0
        %1425 = vmatprep.subr.mxu0 0.0
        %1426 = vmatpush1.msra.mxu0 0.0
        %1427 = vmatprep.subr.mxu0 0.0
        %1428 = vmatpush1.msra.mxu0 0.0
        %1429 = vmatprep.subr.mxu0 0.0
        %1430 = vmatpush1.msra.mxu0 0.0
        %1431 = vmatprep.subr.mxu0 0.0
        %1432 = vmatpush1.msra.mxu0 0.0
        %1433 = vmatprep.subr.mxu0 0.0
        %1434 = vmatpush1.msra.mxu0 0.0
        %1435 = vmatprep.subr.mxu0 0.0
        %1436 = vmatpush1.msra.mxu0 0.0
        %1437 = vmatprep.subr.mxu0 0.0
        %1438 = vmatpush1.msra.mxu0 0.0
        %1439 = vmatprep.mubr.f32.mxu0 0.0
        %v1440 = vand.u32 %v1273, 4294901760
        %1441 = vmatmul.mubr.f32.gmra.mrb[0].mxu0 %v1440
        %v1442 = vpop.f32.mrb[0].mxu0
        %v1443 = vadd.f32 %v1352, %v1442
        %v1444 = vpop.f32.mrb[0].mxu0
        %1445 = vmatprep.mubr.f32.mxu0 0.0
        %v1446 = vand.u32 %v1276, 4294901760
        %1447 = vmatmul.mubr.f32.gmra.mrb[0].mxu0 %v1446
        %v1448 = vpop.f32.mrb[0].mxu0
        %v1449 = vadd.f32 %v1362, %v1448
        %v1450 = vpop.f32.mrb[0].mxu0
        %1451 = vdwg.mxu0
        %1452 = vmatprep.subr.mxu0 0.0
        %v1453 = vand.u32 %v218, 4294901760
        %v1454 = vsub.f32 %v218, %v1453
        %1455 = vmatpush1.msra.mxu0 %v1454
        %1456 = vmatprep.subr.mxu0 0.0
        %v1457 = vand.u32 %v219, 4294901760
        %v1458 = vsub.f32 %v219, %v1457
        %1459 = vmatpush1.msra.mxu0 %v1458
        %1460 = vmatprep.subr.mxu0 0.0
        %1461 = vmatpush1.msra.mxu0 0.0
        %1462 = vmatprep.subr.mxu0 0.0
        %1463 = vmatpush1.msra.mxu0 0.0
        %1464 = vmatprep.subr.mxu0 0.0
        %1465 = vmatpush1.msra.mxu0 0.0
        %1466 = vmatprep.subr.mxu0 0.0
        %1467 = vmatpush1.msra.mxu0 0.0
        %1468 = vmatprep.subr.mxu0 0.0
        %1469 = vmatpush1.msra.mxu0 0.0
        %1470 = vmatprep.subr.mxu0 0.0
        %1471 = vmatpush1.msra.mxu0 0.0
        %1472 = vmatprep.subr.mxu0 0.0
        %1473 = vmatpush1.msra.mxu0 0.0
        %1474 = vmatprep.subr.mxu0 0.0
        %1475 = vmatpush1.msra.mxu0 0.0
        %1476 = vmatprep.subr.mxu0 0.0
        %1477 = vmatpush1.msra.mxu0 0.0
        %1478 = vmatprep.subr.mxu0 0.0
        %1479 = vmatpush1.msra.mxu0 0.0
        %1480 = vmatprep.subr.mxu0 0.0
        %1481 = vmatpush1.msra.mxu0 0.0
        %1482 = vmatprep.subr.mxu0 0.0
        %1483 = vmatpush1.msra.mxu0 0.0
        %1484 = vmatprep.subr.mxu0 0.0
        %1485 = vmatpush1.msra.mxu0 0.0
        %1486 = vmatprep.subr.mxu0 0.0
        %1487 = vmatpush1.msra.mxu0 0.0
        %1488 = vmatprep.subr.mxu0 0.0
        %1489 = vmatpush1.msra.mxu0 0.0
        %1490 = vmatprep.subr.mxu0 0.0
        %1491 = vmatpush1.msra.mxu0 0.0
        %1492 = vmatprep.subr.mxu0 0.0
        %1493 = vmatpush1.msra.mxu0 0.0
        %1494 = vmatprep.subr.mxu0 0.0
        %1495 = vmatpush1.msra.mxu0 0.0
        %1496 = vmatprep.subr.mxu0 0.0
        %1497 = vmatpush1.msra.mxu0 0.0
        %1498 = vmatprep.subr.mxu0 0.0
        %1499 = vmatpush1.msra.mxu0 0.0
        %1500 = vmatprep.subr.mxu0 0.0
        %1501 = vmatpush1.msra.mxu0 0.0
        %1502 = vmatprep.subr.mxu0 0.0
        %1503 = vmatpush1.msra.mxu0 0.0
        %1504 = vmatprep.subr.mxu0 0.0
        %1505 = vmatpush1.msra.mxu0 0.0
        %1506 = vmatprep.subr.mxu0 0.0
        %1507 = vmatpush1.msra.mxu0 0.0
        %1508 = vmatprep.subr.mxu0 0.0
        %1509 = vmatpush1.msra.mxu0 0.0
        %1510 = vmatprep.subr.mxu0 0.0
        %1511 = vmatpush1.msra.mxu0 0.0
        %1512 = vmatprep.subr.mxu0 0.0
        %1513 = vmatpush1.msra.mxu0 0.0
        %1514 = vmatprep.subr.mxu0 0.0
        %1515 = vmatpush1.msra.mxu0 0.0
        %1516 = vmatprep.subr.mxu0 0.0
        %1517 = vmatpush1.msra.mxu0 0.0
        %1518 = vmatprep.subr.mxu0 0.0
        %1519 = vmatpush1.msra.mxu0 0.0
        %1520 = vmatprep.mubr.f32.mxu0 0.0
        %v1521 = vand.u32 %v1273, 4294901760
        %v1522 = vsub.f32 %v1273, %v1521
        %1523 = vmatmul.mubr.f32.gmra.mrb[0].mxu0 %v1522
        %v1524 = vpop.f32.mrb[0].mxu0
        %v1525 = vadd.f32 %v1443, %v1524
        %v1526 = vpop.f32.mrb[0].mxu0
        %1527 = vmatprep.mubr.f32.mxu0 0.0
        %v1528 = vand.u32 %v1276, 4294901760
        %v1529 = vsub.f32 %v1276, %v1528
        %1530 = vmatmul.mubr.f32.gmra.mrb[0].mxu0 %v1529
        %v1531 = vpop.f32.mrb[0].mxu0
        %v1532 = vadd.f32 %v1449, %v1531
        %v1533 = vpop.f32.mrb[0].mxu0
        %1534 = vdwg.mxu0
        %1535 = vmatprep.subr.mxu0 0.0
        %v1536 = vand.u32 %v218, 4294901760
        %1537 = vmatpush1.msra.mxu0 %v1536
        %1538 = vmatprep.subr.mxu0 0.0
        %v1539 = vand.u32 %v219, 4294901760
        %1540 = vmatpush1.msra.mxu0 %v1539
        %1541 = vmatprep.subr.mxu0 0.0
        %1542 = vmatpush1.msra.mxu0 0.0
        %1543 = vmatprep.subr.mxu0 0.0
        %1544 = vmatpush1.msra.mxu0 0.0
        %1545 = vmatprep.subr.mxu0 0.0
        %1546 = vmatpush1.msra.mxu0 0.0
        %1547 = vmatprep.subr.mxu0 0.0
        %1548 = vmatpush1.msra.mxu0 0.0
        %1549 = vmatprep.subr.mxu0 0.0
        %1550 = vmatpush1.msra.mxu0 0.0
        %1551 = vmatprep.subr.mxu0 0.0
        %1552 = vmatpush1.msra.mxu0 0.0
        %1553 = vmatprep.subr.mxu0 0.0
        %1554 = vmatpush1.msra.mxu0 0.0
        %1555 = vmatprep.subr.mxu0 0.0
        %1556 = vmatpush1.msra.mxu0 0.0
        %1557 = vmatprep.subr.mxu0 0.0
        %1558 = vmatpush1.msra.mxu0 0.0
        %1559 = vmatprep.subr.mxu0 0.0
        %1560 = vmatpush1.msra.mxu0 0.0
        %1561 = vmatprep.subr.mxu0 0.0
        %1562 = vmatpush1.msra.mxu0 0.0
        %1563 = vmatprep.subr.mxu0 0.0
        %1564 = vmatpush1.msra.mxu0 0.0
        %1565 = vmatprep.subr.mxu0 0.0
        %1566 = vmatpush1.msra.mxu0 0.0
        %1567 = vmatprep.subr.mxu0 0.0
        %1568 = vmatpush1.msra.mxu0 0.0
        %1569 = vmatprep.subr.mxu0 0.0
        %1570 = vmatpush1.msra.mxu0 0.0
        %1571 = vmatprep.subr.mxu0 0.0
        %1572 = vmatpush1.msra.mxu0 0.0
        %1573 = vmatprep.subr.mxu0 0.0
        %1574 = vmatpush1.msra.mxu0 0.0
        %1575 = vmatprep.subr.mxu0 0.0
        %1576 = vmatpush1.msra.mxu0 0.0
        %1577 = vmatprep.subr.mxu0 0.0
        %1578 = vmatpush1.msra.mxu0 0.0
        %1579 = vmatprep.subr.mxu0 0.0
        %1580 = vmatpush1.msra.mxu0 0.0
        %1581 = vmatprep.subr.mxu0 0.0
        %1582 = vmatpush1.msra.mxu0 0.0
        %1583 = vmatprep.subr.mxu0 0.0
        %1584 = vmatpush1.msra.mxu0 0.0
        %1585 = vmatprep.subr.mxu0 0.0
        %1586 = vmatpush1.msra.mxu0 0.0
        %1587 = vmatprep.subr.mxu0 0.0
        %1588 = vmatpush1.msra.mxu0 0.0
        %1589 = vmatprep.subr.mxu0 0.0
        %1590 = vmatpush1.msra.mxu0 0.0
        %1591 = vmatprep.subr.mxu0 0.0
        %1592 = vmatpush1.msra.mxu0 0.0
        %1593 = vmatprep.subr.mxu0 0.0
        %1594 = vmatpush1.msra.mxu0 0.0
        %1595 = vmatprep.subr.mxu0 0.0
        %1596 = vmatpush1.msra.mxu0 0.0
        %1597 = vmatprep.subr.mxu0 0.0
        %1598 = vmatpush1.msra.mxu0 0.0
        %1599 = vmatprep.subr.mxu0 0.0
        %1600 = vmatpush1.msra.mxu0 0.0
        %1601 = vmatprep.mubr.f32.mxu0 0.0
        %v1602 = vand.u32 %v1273, 4294901760
        %v1603 = vsub.f32 %v1273, %v1602
        %v1604 = vand.u32 %v1603, 4294901760
        %1605 = vmatmul.mubr.f32.gmra.mrb[0].mxu0 %v1604
        %v1606 = vpop.f32.mrb[0].mxu0
        %v1607 = vadd.f32 %v1525, %v1606
        %v1608 = vpop.f32.mrb[0].mxu0
        %1609 = vmatprep.mubr.f32.mxu0 0.0
        %v1610 = vand.u32 %v1276, 4294901760
        %v1611 = vsub.f32 %v1276, %v1610
        %v1612 = vand.u32 %v1611, 4294901760
        %1613 = vmatmul.mubr.f32.gmra.mrb[0].mxu0 %v1612
        %v1614 = vpop.f32.mrb[0].mxu0
        %v1615 = vadd.f32 %v1532, %v1614
        %v1616 = vpop.f32.mrb[0].mxu0
        %1617 = vdwg.mxu0
        %1618 = vmatprep.subr.mxu0 0.0
        %v1619 = vand.u32 %v218, 4294901760
        %v1620 = vsub.f32 %v218, %v1619
        %v1621 = vand.u32 %v1620, 4294901760
        %1622 = vmatpush1.msra.mxu0 %v1621
        %1623 = vmatprep.subr.mxu0 0.0
        %v1624 = vand.u32 %v219, 4294901760
        %v1625 = vsub.f32 %v219, %v1624
        %v1626 = vand.u32 %v1625, 4294901760
        %1627 = vmatpush1.msra.mxu0 %v1626
        %1628 = vmatprep.subr.mxu0 0.0
        %1629 = vmatpush1.msra.mxu0 0.0
        %1630 = vmatprep.subr.mxu0 0.0
        %1631 = vmatpush1.msra.mxu0 0.0
        %1632 = vmatprep.subr.mxu0 0.0
        %1633 = vmatpush1.msra.mxu0 0.0
        %1634 = vmatprep.subr.mxu0 0.0
        %1635 = vmatpush1.msra.mxu0 0.0
        %1636 = vmatprep.subr.mxu0 0.0
        %1637 = vmatpush1.msra.mxu0 0.0
        %1638 = vmatprep.subr.mxu0 0.0
        %1639 = vmatpush1.msra.mxu0 0.0
        %1640 = vmatprep.subr.mxu0 0.0
        %1641 = vmatpush1.msra.mxu0 0.0
        %1642 = vmatprep.subr.mxu0 0.0
        %1643 = vmatpush1.msra.mxu0 0.0
        %1644 = vmatprep.subr.mxu0 0.0
        %1645 = vmatpush1.msra.mxu0 0.0
        %1646 = vmatprep.subr.mxu0 0.0
        %1647 = vmatpush1.msra.mxu0 0.0
        %1648 = vmatprep.subr.mxu0 0.0
        %1649 = vmatpush1.msra.mxu0 0.0
        %1650 = vmatprep.subr.mxu0 0.0
        %1651 = vmatpush1.msra.mxu0 0.0
        %1652 = vmatprep.subr.mxu0 0.0
        %1653 = vmatpush1.msra.mxu0 0.0
        %1654 = vmatprep.subr.mxu0 0.0
        %1655 = vmatpush1.msra.mxu0 0.0
        %1656 = vmatprep.subr.mxu0 0.0
        %1657 = vmatpush1.msra.mxu0 0.0
        %1658 = vmatprep.subr.mxu0 0.0
        %1659 = vmatpush1.msra.mxu0 0.0
        %1660 = vmatprep.subr.mxu0 0.0
        %1661 = vmatpush1.msra.mxu0 0.0
        %1662 = vmatprep.subr.mxu0 0.0
        %1663 = vmatpush1.msra.mxu0 0.0
        %1664 = vmatprep.subr.mxu0 0.0
        %1665 = vmatpush1.msra.mxu0 0.0
        %1666 = vmatprep.subr.mxu0 0.0
        %1667 = vmatpush1.msra.mxu0 0.0
        %1668 = vmatprep.subr.mxu0 0.0
        %1669 = vmatpush1.msra.mxu0 0.0
        %1670 = vmatprep.subr.mxu0 0.0
        %1671 = vmatpush1.msra.mxu0 0.0
        %1672 = vmatprep.subr.mxu0 0.0
        %1673 = vmatpush1.msra.mxu0 0.0
        %1674 = vmatprep.subr.mxu0 0.0
        %1675 = vmatpush1.msra.mxu0 0.0
        %1676 = vmatprep.subr.mxu0 0.0
        %1677 = vmatpush1.msra.mxu0 0.0
        %1678 = vmatprep.subr.mxu0 0.0
        %1679 = vmatpush1.msra.mxu0 0.0
        %1680 = vmatprep.subr.mxu0 0.0
        %1681 = vmatpush1.msra.mxu0 0.0
        %1682 = vmatprep.subr.mxu0 0.0
        %1683 = vmatpush1.msra.mxu0 0.0
        %1684 = vmatprep.subr.mxu0 0.0
        %1685 = vmatpush1.msra.mxu0 0.0
        %1686 = vmatprep.subr.mxu0 0.0
        %1687 = vmatpush1.msra.mxu0 0.0
        %1688 = vmatprep.mubr.f32.mxu0 0.0
        %v1689 = vand.u32 %v1273, 4294901760
        %1690 = vmatmul.mubr.f32.gmra.mrb[0].mxu0 %v1689
        %v1691 = vpop.f32.mrb[0].mxu0
        %v1692 = vadd.f32 %v1607, %v1691
        %v1693 = vpop.f32.mrb[0].mxu0
        %1694 = vmatprep.mubr.f32.mxu0 0.0
        %v1695 = vand.u32 %v1276, 4294901760
        %1696 = vmatmul.mubr.f32.gmra.mrb[0].mxu0 %v1695
        %v1697 = vpop.f32.mrb[0].mxu0
        %v1698 = vadd.f32 %v1615, %v1697
        %v1699 = vpop.f32.mrb[0].mxu0
        %1700 = vdwg.mxu0
        %1701 = vmatprep.subr.mxu0 0.0
        %v1702 = vand.u32 %v218, 4294901760
        %1703 = vmatpush1.msra.mxu0 %v1702
        %1704 = vmatprep.subr.mxu0 0.0
        %v1705 = vand.u32 %v219, 4294901760
        %1706 = vmatpush1.msra.mxu0 %v1705
        %1707 = vmatprep.subr.mxu0 0.0
        %1708 = vmatpush1.msra.mxu0 0.0
        %1709 = vmatprep.subr.mxu0 0.0
        %1710 = vmatpush1.msra.mxu0 0.0
        %1711 = vmatprep.subr.mxu0 0.0
        %1712 = vmatpush1.msra.mxu0 0.0
        %1713 = vmatprep.subr.mxu0 0.0
        %1714 = vmatpush1.msra.mxu0 0.0
        %1715 = vmatprep.subr.mxu0 0.0
        %1716 = vmatpush1.msra.mxu0 0.0
        %1717 = vmatprep.subr.mxu0 0.0
        %1718 = vmatpush1.msra.mxu0 0.0
        %1719 = vmatprep.subr.mxu0 0.0
        %1720 = vmatpush1.msra.mxu0 0.0
        %1721 = vmatprep.subr.mxu0 0.0
        %1722 = vmatpush1.msra.mxu0 0.0
        %1723 = vmatprep.subr.mxu0 0.0
        %1724 = vmatpush1.msra.mxu0 0.0
        %1725 = vmatprep.subr.mxu0 0.0
        %1726 = vmatpush1.msra.mxu0 0.0
        %1727 = vmatprep.subr.mxu0 0.0
        %1728 = vmatpush1.msra.mxu0 0.0
        %1729 = vmatprep.subr.mxu0 0.0
        %1730 = vmatpush1.msra.mxu0 0.0
        %1731 = vmatprep.subr.mxu0 0.0
        %1732 = vmatpush1.msra.mxu0 0.0
        %1733 = vmatprep.subr.mxu0 0.0
        %1734 = vmatpush1.msra.mxu0 0.0
        %1735 = vmatprep.subr.mxu0 0.0
        %1736 = vmatpush1.msra.mxu0 0.0
        %1737 = vmatprep.subr.mxu0 0.0
        %1738 = vmatpush1.msra.mxu0 0.0
        %1739 = vmatprep.subr.mxu0 0.0
        %1740 = vmatpush1.msra.mxu0 0.0
        %1741 = vmatprep.subr.mxu0 0.0
        %1742 = vmatpush1.msra.mxu0 0.0
        %1743 = vmatprep.subr.mxu0 0.0
        %1744 = vmatpush1.msra.mxu0 0.0
        %1745 = vmatprep.subr.mxu0 0.0
        %1746 = vmatpush1.msra.mxu0 0.0
        %1747 = vmatprep.subr.mxu0 0.0
        %1748 = vmatpush1.msra.mxu0 0.0
        %1749 = vmatprep.subr.mxu0 0.0
        %1750 = vmatpush1.msra.mxu0 0.0
        %1751 = vmatprep.subr.mxu0 0.0
        %1752 = vmatpush1.msra.mxu0 0.0
        %1753 = vmatprep.subr.mxu0 0.0
        %1754 = vmatpush1.msra.mxu0 0.0
        %1755 = vmatprep.subr.mxu0 0.0
        %1756 = vmatpush1.msra.mxu0 0.0
        %1757 = vmatprep.subr.mxu0 0.0
        %1758 = vmatpush1.msra.mxu0 0.0
        %1759 = vmatprep.subr.mxu0 0.0
        %1760 = vmatpush1.msra.mxu0 0.0
        %1761 = vmatprep.subr.mxu0 0.0
        %1762 = vmatpush1.msra.mxu0 0.0
        %1763 = vmatprep.subr.mxu0 0.0
        %1764 = vmatpush1.msra.mxu0 0.0
        %1765 = vmatprep.subr.mxu0 0.0
        %1766 = vmatpush1.msra.mxu0 0.0
        %1767 = vmatprep.mubr.f32.mxu0 0.0
        %v1768 = vand.u32 %v1273, 4294901760
        %1769 = vmatmul.mubr.f32.gmra.mrb[0].mxu0 %v1768
        %v1770 = vpop.f32.mrb[0].mxu0
        %v1771 = vadd.f32 %v1692, %v1770
        %v1772 = vpop.f32.mrb[0].mxu0
        %1773 = vmatprep.mubr.f32.mxu0 0.0
        %v1774 = vand.u32 %v1276, 4294901760
        %1775 = vmatmul.mubr.f32.gmra.mrb[0].mxu0 %v1774
        %v1776 = vpop.f32.mrb[0].mxu0
        %v1777 = vadd.f32 %v1698, %v1776
        %v1778 = vpop.f32.mrb[0].mxu0
        %1779 = vdwg.mxu0
        %s1780 = scalar_lea.vmem %s215, 32
        %1781 = vst.msk [vmem:[%s1780] sm:$0xff] %vm731, %v1771
        %1782 = vst.msk [vmem:[%s1780 + $0x8] sm:$0xff] %vm731, %v1777
        %1785 = vrot.lane.b32.xlu0 %v1771, 32
        %v1786 = vpop.permute.xlu0 %1785
        %1787 = vrot.lane.b32.xlu0 %v1777, 32
        %v1788 = vpop.permute.xlu0 %1787
        %1791 = vst.msk [vmem:[%s1780] sm:$0xff] %vm742, %v1786
        %1792 = vst.msk [vmem:[%s1780 + $0x8] sm:$0xff] %vm742, %v1788
        %s1793 = scalar_lea.vmem %s170, 48 [#allocation2]
        %v1794 = vld [vmem:[%s1793] sm:$0xff]
        %v1795 = vld [vmem:[%s1793 + $0x8] sm:$0xff]
        %v1797 = vsel %vm222, %v1794, 0
        %v1800 = vsel %vm222, %v1795, 0
        %1802 = vmatprep.subr.mxu0 0.0
        %v1803 = vand.u32 %v218, 4294901760
        %1804 = vmatpush1.msra.mxu0 %v1803
        %1805 = vmatprep.subr.mxu0 0.0
        %v1806 = vand.u32 %v219, 4294901760
        %1807 = vmatpush1.msra.mxu0 %v1806
        %1808 = vmatprep.subr.mxu0 0.0
        %1809 = vmatpush1.msra.mxu0 0.0
        %1810 = vmatprep.subr.mxu0 0.0
        %1811 = vmatpush1.msra.mxu0 0.0
        %1812 = vmatprep.subr.mxu0 0.0
        %1813 = vmatpush1.msra.mxu0 0.0
        %1814 = vmatprep.subr.mxu0 0.0
        %1815 = vmatpush1.msra.mxu0 0.0
        %1816 = vmatprep.subr.mxu0 0.0
        %1817 = vmatpush1.msra.mxu0 0.0
        %1818 = vmatprep.subr.mxu0 0.0
        %1819 = vmatpush1.msra.mxu0 0.0
        %1820 = vmatprep.subr.mxu0 0.0
        %1821 = vmatpush1.msra.mxu0 0.0
        %1822 = vmatprep.subr.mxu0 0.0
        %1823 = vmatpush1.msra.mxu0 0.0
        %1824 = vmatprep.subr.mxu0 0.0
        %1825 = vmatpush1.msra.mxu0 0.0
        %1826 = vmatprep.subr.mxu0 0.0
        %1827 = vmatpush1.msra.mxu0 0.0
        %1828 = vmatprep.subr.mxu0 0.0
        %1829 = vmatpush1.msra.mxu0 0.0
        %1830 = vmatprep.subr.mxu0 0.0
        %1831 = vmatpush1.msra.mxu0 0.0
        %1832 = vmatprep.subr.mxu0 0.0
        %1833 = vmatpush1.msra.mxu0 0.0
        %1834 = vmatprep.subr.mxu0 0.0
        %1835 = vmatpush1.msra.mxu0 0.0
        %1836 = vmatprep.subr.mxu0 0.0
        %1837 = vmatpush1.msra.mxu0 0.0
        %1838 = vmatprep.subr.mxu0 0.0
        %1839 = vmatpush1.msra.mxu0 0.0
        %1840 = vmatprep.subr.mxu0 0.0
        %1841 = vmatpush1.msra.mxu0 0.0
        %1842 = vmatprep.subr.mxu0 0.0
        %1843 = vmatpush1.msra.mxu0 0.0
        %1844 = vmatprep.subr.mxu0 0.0
        %1845 = vmatpush1.msra.mxu0 0.0
        %1846 = vmatprep.subr.mxu0 0.0
        %1847 = vmatpush1.msra.mxu0 0.0
        %1848 = vmatprep.subr.mxu0 0.0
        %1849 = vmatpush1.msra.mxu0 0.0
        %1850 = vmatprep.subr.mxu0 0.0
        %1851 = vmatpush1.msra.mxu0 0.0
        %1852 = vmatprep.subr.mxu0 0.0
        %1853 = vmatpush1.msra.mxu0 0.0
        %1854 = vmatprep.subr.mxu0 0.0
        %1855 = vmatpush1.msra.mxu0 0.0
        %1856 = vmatprep.subr.mxu0 0.0
        %1857 = vmatpush1.msra.mxu0 0.0
        %1858 = vmatprep.subr.mxu0 0.0
        %1859 = vmatpush1.msra.mxu0 0.0
        %1860 = vmatprep.subr.mxu0 0.0
        %1861 = vmatpush1.msra.mxu0 0.0
        %1862 = vmatprep.subr.mxu0 0.0
        %1863 = vmatpush1.msra.mxu0 0.0
        %1864 = vmatprep.subr.mxu0 0.0
        %1865 = vmatpush1.msra.mxu0 0.0
        %1866 = vmatprep.subr.mxu0 0.0
        %1867 = vmatpush1.msra.mxu0 0.0
        %1868 = vmatprep.mubr.f32.mxu0 0.0
        %v1869 = vand.u32 %v1797, 4294901760
        %v1870 = vsub.f32 %v1797, %v1869
        %v1871 = vand.u32 %v1870, 4294901760
        %v1872 = vsub.f32 %v1870, %v1871
        %v1873 = vand.u32 %v1872, 4294901760
        %1874 = vmatmul.mubr.f32.gmra.mrb[0].mxu0 %v1873
        %v1875 = vpop.f32.mrb[0].mxu0
        %v1876 = vadd.f32 0.0, %v1875
        %v1877 = vpop.f32.mrb[0].mxu0
        %1878 = vmatprep.mubr.f32.mxu0 0.0
        %v1879 = vand.u32 %v1800, 4294901760
        %v1880 = vsub.f32 %v1800, %v1879
        %v1881 = vand.u32 %v1880, 4294901760
        %v1882 = vsub.f32 %v1880, %v1881
        %v1883 = vand.u32 %v1882, 4294901760
        %1884 = vmatmul.mubr.f32.gmra.mrb[0].mxu0 %v1883
        %v1885 = vpop.f32.mrb[0].mxu0
        %v1886 = vadd.f32 0.0, %v1885
        %v1887 = vpop.f32.mrb[0].mxu0
        %1888 = vdwg.mxu0
        %1889 = vmatprep.subr.mxu0 0.0
        %v1890 = vand.u32 %v218, 4294901760
        %v1891 = vsub.f32 %v218, %v1890
        %v1892 = vand.u32 %v1891, 4294901760
        %v1893 = vsub.f32 %v1891, %v1892
        %v1894 = vand.u32 %v1893, 4294901760
        %1895 = vmatpush1.msra.mxu0 %v1894
        %1896 = vmatprep.subr.mxu0 0.0
        %v1897 = vand.u32 %v219, 4294901760
        %v1898 = vsub.f32 %v219, %v1897
        %v1899 = vand.u32 %v1898, 4294901760
        %v1900 = vsub.f32 %v1898, %v1899
        %v1901 = vand.u32 %v1900, 4294901760
        %1902 = vmatpush1.msra.mxu0 %v1901
        %1903 = vmatprep.subr.mxu0 0.0
        %1904 = vmatpush1.msra.mxu0 0.0
        %1905 = vmatprep.subr.mxu0 0.0
        %1906 = vmatpush1.msra.mxu0 0.0
        %1907 = vmatprep.subr.mxu0 0.0
        %1908 = vmatpush1.msra.mxu0 0.0
        %1909 = vmatprep.subr.mxu0 0.0
        %1910 = vmatpush1.msra.mxu0 0.0
        %1911 = vmatprep.subr.mxu0 0.0
        %1912 = vmatpush1.msra.mxu0 0.0
        %1913 = vmatprep.subr.mxu0 0.0
        %1914 = vmatpush1.msra.mxu0 0.0
        %1915 = vmatprep.subr.mxu0 0.0
        %1916 = vmatpush1.msra.mxu0 0.0
        %1917 = vmatprep.subr.mxu0 0.0
        %1918 = vmatpush1.msra.mxu0 0.0
        %1919 = vmatprep.subr.mxu0 0.0
        %1920 = vmatpush1.msra.mxu0 0.0
        %1921 = vmatprep.subr.mxu0 0.0
        %1922 = vmatpush1.msra.mxu0 0.0
        %1923 = vmatprep.subr.mxu0 0.0
        %1924 = vmatpush1.msra.mxu0 0.0
        %1925 = vmatprep.subr.mxu0 0.0
        %1926 = vmatpush1.msra.mxu0 0.0
        %1927 = vmatprep.subr.mxu0 0.0
        %1928 = vmatpush1.msra.mxu0 0.0
        %1929 = vmatprep.subr.mxu0 0.0
        %1930 = vmatpush1.msra.mxu0 0.0
        %1931 = vmatprep.subr.mxu0 0.0
        %1932 = vmatpush1.msra.mxu0 0.0
        %1933 = vmatprep.subr.mxu0 0.0
        %1934 = vmatpush1.msra.mxu0 0.0
        %1935 = vmatprep.subr.mxu0 0.0
        %1936 = vmatpush1.msra.mxu0 0.0
        %1937 = vmatprep.subr.mxu0 0.0
        %1938 = vmatpush1.msra.mxu0 0.0
        %1939 = vmatprep.subr.mxu0 0.0
        %1940 = vmatpush1.msra.mxu0 0.0
        %1941 = vmatprep.subr.mxu0 0.0
        %1942 = vmatpush1.msra.mxu0 0.0
        %1943 = vmatprep.subr.mxu0 0.0
        %1944 = vmatpush1.msra.mxu0 0.0
        %1945 = vmatprep.subr.mxu0 0.0
        %1946 = vmatpush1.msra.mxu0 0.0
        %1947 = vmatprep.subr.mxu0 0.0
        %1948 = vmatpush1.msra.mxu0 0.0
        %1949 = vmatprep.subr.mxu0 0.0
        %1950 = vmatpush1.msra.mxu0 0.0
        %1951 = vmatprep.subr.mxu0 0.0
        %1952 = vmatpush1.msra.mxu0 0.0
        %1953 = vmatprep.subr.mxu0 0.0
        %1954 = vmatpush1.msra.mxu0 0.0
        %1955 = vmatprep.subr.mxu0 0.0
        %1956 = vmatpush1.msra.mxu0 0.0
        %1957 = vmatprep.subr.mxu0 0.0
        %1958 = vmatpush1.msra.mxu0 0.0
        %1959 = vmatprep.subr.mxu0 0.0
        %1960 = vmatpush1.msra.mxu0 0.0
        %1961 = vmatprep.subr.mxu0 0.0
        %1962 = vmatpush1.msra.mxu0 0.0
        %1963 = vmatprep.mubr.f32.mxu0 0.0
        %v1964 = vand.u32 %v1797, 4294901760
        %1965 = vmatmul.mubr.f32.gmra.mrb[0].mxu0 %v1964
        %v1966 = vpop.f32.mrb[0].mxu0
        %v1967 = vadd.f32 %v1876, %v1966
        %v1968 = vpop.f32.mrb[0].mxu0
        %1969 = vmatprep.mubr.f32.mxu0 0.0
        %v1970 = vand.u32 %v1800, 4294901760
        %1971 = vmatmul.mubr.f32.gmra.mrb[0].mxu0 %v1970
        %v1972 = vpop.f32.mrb[0].mxu0
        %v1973 = vadd.f32 %v1886, %v1972
        %v1974 = vpop.f32.mrb[0].mxu0
        %1975 = vdwg.mxu0
        %1976 = vmatprep.subr.mxu0 0.0
        %v1977 = vand.u32 %v218, 4294901760
        %v1978 = vsub.f32 %v218, %v1977
        %1979 = vmatpush1.msra.mxu0 %v1978
        %1980 = vmatprep.subr.mxu0 0.0
        %v1981 = vand.u32 %v219, 4294901760
        %v1982 = vsub.f32 %v219, %v1981
        %1983 = vmatpush1.msra.mxu0 %v1982
        %1984 = vmatprep.subr.mxu0 0.0
        %1985 = vmatpush1.msra.mxu0 0.0
        %1986 = vmatprep.subr.mxu0 0.0
        %1987 = vmatpush1.msra.mxu0 0.0
        %1988 = vmatprep.subr.mxu0 0.0
        %1989 = vmatpush1.msra.mxu0 0.0
        %1990 = vmatprep.subr.mxu0 0.0
        %1991 = vmatpush1.msra.mxu0 0.0
        %1992 = vmatprep.subr.mxu0 0.0
        %1993 = vmatpush1.msra.mxu0 0.0
        %1994 = vmatprep.subr.mxu0 0.0
        %1995 = vmatpush1.msra.mxu0 0.0
        %1996 = vmatprep.subr.mxu0 0.0
        %1997 = vmatpush1.msra.mxu0 0.0
        %1998 = vmatprep.subr.mxu0 0.0
        %1999 = vmatpush1.msra.mxu0 0.0
        %2000 = vmatprep.subr.mxu0 0.0
        %2001 = vmatpush1.msra.mxu0 0.0
        %2002 = vmatprep.subr.mxu0 0.0
        %2003 = vmatpush1.msra.mxu0 0.0
        %2004 = vmatprep.subr.mxu0 0.0
        %2005 = vmatpush1.msra.mxu0 0.0
        %2006 = vmatprep.subr.mxu0 0.0
        %2007 = vmatpush1.msra.mxu0 0.0
        %2008 = vmatprep.subr.mxu0 0.0
        %2009 = vmatpush1.msra.mxu0 0.0
        %2010 = vmatprep.subr.mxu0 0.0
        %2011 = vmatpush1.msra.mxu0 0.0
        %2012 = vmatprep.subr.mxu0 0.0
        %2013 = vmatpush1.msra.mxu0 0.0
        %2014 = vmatprep.subr.mxu0 0.0
        %2015 = vmatpush1.msra.mxu0 0.0
        %2016 = vmatprep.subr.mxu0 0.0
        %2017 = vmatpush1.msra.mxu0 0.0
        %2018 = vmatprep.subr.mxu0 0.0
        %2019 = vmatpush1.msra.mxu0 0.0
        %2020 = vmatprep.subr.mxu0 0.0
        %2021 = vmatpush1.msra.mxu0 0.0
        %2022 = vmatprep.subr.mxu0 0.0
        %2023 = vmatpush1.msra.mxu0 0.0
        %2024 = vmatprep.subr.mxu0 0.0
        %2025 = vmatpush1.msra.mxu0 0.0
        %2026 = vmatprep.subr.mxu0 0.0
        %2027 = vmatpush1.msra.mxu0 0.0
        %2028 = vmatprep.subr.mxu0 0.0
        %2029 = vmatpush1.msra.mxu0 0.0
        %2030 = vmatprep.subr.mxu0 0.0
        %2031 = vmatpush1.msra.mxu0 0.0
        %2032 = vmatprep.subr.mxu0 0.0
        %2033 = vmatpush1.msra.mxu0 0.0
        %2034 = vmatprep.subr.mxu0 0.0
        %2035 = vmatpush1.msra.mxu0 0.0
        %2036 = vmatprep.subr.mxu0 0.0
        %2037 = vmatpush1.msra.mxu0 0.0
        %2038 = vmatprep.subr.mxu0 0.0
        %2039 = vmatpush1.msra.mxu0 0.0
        %2040 = vmatprep.subr.mxu0 0.0
        %2041 = vmatpush1.msra.mxu0 0.0
        %2042 = vmatprep.subr.mxu0 0.0
        %2043 = vmatpush1.msra.mxu0 0.0
        %2044 = vmatprep.mubr.f32.mxu0 0.0
        %v2045 = vand.u32 %v1797, 4294901760
        %v2046 = vsub.f32 %v1797, %v2045
        %2047 = vmatmul.mubr.f32.gmra.mrb[0].mxu0 %v2046
        %v2048 = vpop.f32.mrb[0].mxu0
        %v2049 = vadd.f32 %v1967, %v2048
        %v2050 = vpop.f32.mrb[0].mxu0
        %2051 = vmatprep.mubr.f32.mxu0 0.0
        %v2052 = vand.u32 %v1800, 4294901760
        %v2053 = vsub.f32 %v1800, %v2052
        %2054 = vmatmul.mubr.f32.gmra.mrb[0].mxu0 %v2053
        %v2055 = vpop.f32.mrb[0].mxu0
        %v2056 = vadd.f32 %v1973, %v2055
        %v2057 = vpop.f32.mrb[0].mxu0
        %2058 = vdwg.mxu0
        %2059 = vmatprep.subr.mxu0 0.0
        %v2060 = vand.u32 %v218, 4294901760
        %2061 = vmatpush1.msra.mxu0 %v2060
        %2062 = vmatprep.subr.mxu0 0.0
        %v2063 = vand.u32 %v219, 4294901760
        %2064 = vmatpush1.msra.mxu0 %v2063
        %2065 = vmatprep.subr.mxu0 0.0
        %2066 = vmatpush1.msra.mxu0 0.0
        %2067 = vmatprep.subr.mxu0 0.0
        %2068 = vmatpush1.msra.mxu0 0.0
        %2069 = vmatprep.subr.mxu0 0.0
        %2070 = vmatpush1.msra.mxu0 0.0
        %2071 = vmatprep.subr.mxu0 0.0
        %2072 = vmatpush1.msra.mxu0 0.0
        %2073 = vmatprep.subr.mxu0 0.0
        %2074 = vmatpush1.msra.mxu0 0.0
        %2075 = vmatprep.subr.mxu0 0.0
        %2076 = vmatpush1.msra.mxu0 0.0
        %2077 = vmatprep.subr.mxu0 0.0
        %2078 = vmatpush1.msra.mxu0 0.0
        %2079 = vmatprep.subr.mxu0 0.0
        %2080 = vmatpush1.msra.mxu0 0.0
        %2081 = vmatprep.subr.mxu0 0.0
        %2082 = vmatpush1.msra.mxu0 0.0
        %2083 = vmatprep.subr.mxu0 0.0
        %2084 = vmatpush1.msra.mxu0 0.0
        %2085 = vmatprep.subr.mxu0 0.0
        %2086 = vmatpush1.msra.mxu0 0.0
        %2087 = vmatprep.subr.mxu0 0.0
        %2088 = vmatpush1.msra.mxu0 0.0
        %2089 = vmatprep.subr.mxu0 0.0
        %2090 = vmatpush1.msra.mxu0 0.0
        %2091 = vmatprep.subr.mxu0 0.0
        %2092 = vmatpush1.msra.mxu0 0.0
        %2093 = vmatprep.subr.mxu0 0.0
        %2094 = vmatpush1.msra.mxu0 0.0
        %2095 = vmatprep.subr.mxu0 0.0
        %2096 = vmatpush1.msra.mxu0 0.0
        %2097 = vmatprep.subr.mxu0 0.0
        %2098 = vmatpush1.msra.mxu0 0.0
        %2099 = vmatprep.subr.mxu0 0.0
        %2100 = vmatpush1.msra.mxu0 0.0
        %2101 = vmatprep.subr.mxu0 0.0
        %2102 = vmatpush1.msra.mxu0 0.0
        %2103 = vmatprep.subr.mxu0 0.0
        %2104 = vmatpush1.msra.mxu0 0.0
        %2105 = vmatprep.subr.mxu0 0.0
        %2106 = vmatpush1.msra.mxu0 0.0
        %2107 = vmatprep.subr.mxu0 0.0
        %2108 = vmatpush1.msra.mxu0 0.0
        %2109 = vmatprep.subr.mxu0 0.0
        %2110 = vmatpush1.msra.mxu0 0.0
        %2111 = vmatprep.subr.mxu0 0.0
        %2112 = vmatpush1.msra.mxu0 0.0
        %2113 = vmatprep.subr.mxu0 0.0
        %2114 = vmatpush1.msra.mxu0 0.0
        %2115 = vmatprep.subr.mxu0 0.0
        %2116 = vmatpush1.msra.mxu0 0.0
        %2117 = vmatprep.subr.mxu0 0.0
        %2118 = vmatpush1.msra.mxu0 0.0
        %2119 = vmatprep.subr.mxu0 0.0
        %2120 = vmatpush1.msra.mxu0 0.0
        %2121 = vmatprep.subr.mxu0 0.0
        %2122 = vmatpush1.msra.mxu0 0.0
        %2123 = vmatprep.subr.mxu0 0.0
        %2124 = vmatpush1.msra.mxu0 0.0
        %2125 = vmatprep.mubr.f32.mxu0 0.0
        %v2126 = vand.u32 %v1797, 4294901760
        %v2127 = vsub.f32 %v1797, %v2126
        %v2128 = vand.u32 %v2127, 4294901760
        %2129 = vmatmul.mubr.f32.gmra.mrb[0].mxu0 %v2128
        %v2130 = vpop.f32.mrb[0].mxu0
        %v2131 = vadd.f32 %v2049, %v2130
        %v2132 = vpop.f32.mrb[0].mxu0
        %2133 = vmatprep.mubr.f32.mxu0 0.0
        %v2134 = vand.u32 %v1800, 4294901760
        %v2135 = vsub.f32 %v1800, %v2134
        %v2136 = vand.u32 %v2135, 4294901760
        %2137 = vmatmul.mubr.f32.gmra.mrb[0].mxu0 %v2136
        %v2138 = vpop.f32.mrb[0].mxu0
        %v2139 = vadd.f32 %v2056, %v2138
        %v2140 = vpop.f32.mrb[0].mxu0
        %2141 = vdwg.mxu0
        %2142 = vmatprep.subr.mxu0 0.0
        %v2143 = vand.u32 %v218, 4294901760
        %v2144 = vsub.f32 %v218, %v2143
        %v2145 = vand.u32 %v2144, 4294901760
        %2146 = vmatpush1.msra.mxu0 %v2145
        %2147 = vmatprep.subr.mxu0 0.0
        %v2148 = vand.u32 %v219, 4294901760
        %v2149 = vsub.f32 %v219, %v2148
        %v2150 = vand.u32 %v2149, 4294901760
        %2151 = vmatpush1.msra.mxu0 %v2150
        %2152 = vmatprep.subr.mxu0 0.0
        %2153 = vmatpush1.msra.mxu0 0.0
        %2154 = vmatprep.subr.mxu0 0.0
        %2155 = vmatpush1.msra.mxu0 0.0
        %2156 = vmatprep.subr.mxu0 0.0
        %2157 = vmatpush1.msra.mxu0 0.0
        %2158 = vmatprep.subr.mxu0 0.0
        %2159 = vmatpush1.msra.mxu0 0.0
        %2160 = vmatprep.subr.mxu0 0.0
        %2161 = vmatpush1.msra.mxu0 0.0
        %2162 = vmatprep.subr.mxu0 0.0
        %2163 = vmatpush1.msra.mxu0 0.0
        %2164 = vmatprep.subr.mxu0 0.0
        %2165 = vmatpush1.msra.mxu0 0.0
        %2166 = vmatprep.subr.mxu0 0.0
        %2167 = vmatpush1.msra.mxu0 0.0
        %2168 = vmatprep.subr.mxu0 0.0
        %2169 = vmatpush1.msra.mxu0 0.0
        %2170 = vmatprep.subr.mxu0 0.0
        %2171 = vmatpush1.msra.mxu0 0.0
        %2172 = vmatprep.subr.mxu0 0.0
        %2173 = vmatpush1.msra.mxu0 0.0
        %2174 = vmatprep.subr.mxu0 0.0
        %2175 = vmatpush1.msra.mxu0 0.0
        %2176 = vmatprep.subr.mxu0 0.0
        %2177 = vmatpush1.msra.mxu0 0.0
        %2178 = vmatprep.subr.mxu0 0.0
        %2179 = vmatpush1.msra.mxu0 0.0
        %2180 = vmatprep.subr.mxu0 0.0
        %2181 = vmatpush1.msra.mxu0 0.0
        %2182 = vmatprep.subr.mxu0 0.0
        %2183 = vmatpush1.msra.mxu0 0.0
        %2184 = vmatprep.subr.mxu0 0.0
        %2185 = vmatpush1.msra.mxu0 0.0
        %2186 = vmatprep.subr.mxu0 0.0
        %2187 = vmatpush1.msra.mxu0 0.0
        %2188 = vmatprep.subr.mxu0 0.0
        %2189 = vmatpush1.msra.mxu0 0.0
        %2190 = vmatprep.subr.mxu0 0.0
        %2191 = vmatpush1.msra.mxu0 0.0
        %2192 = vmatprep.subr.mxu0 0.0
        %2193 = vmatpush1.msra.mxu0 0.0
        %2194 = vmatprep.subr.mxu0 0.0
        %2195 = vmatpush1.msra.mxu0 0.0
        %2196 = vmatprep.subr.mxu0 0.0
        %2197 = vmatpush1.msra.mxu0 0.0
        %2198 = vmatprep.subr.mxu0 0.0
        %2199 = vmatpush1.msra.mxu0 0.0
        %2200 = vmatprep.subr.mxu0 0.0
        %2201 = vmatpush1.msra.mxu0 0.0
        %2202 = vmatprep.subr.mxu0 0.0
        %2203 = vmatpush1.msra.mxu0 0.0
        %2204 = vmatprep.subr.mxu0 0.0
        %2205 = vmatpush1.msra.mxu0 0.0
        %2206 = vmatprep.subr.mxu0 0.0
        %2207 = vmatpush1.msra.mxu0 0.0
        %2208 = vmatprep.subr.mxu0 0.0
        %2209 = vmatpush1.msra.mxu0 0.0
        %2210 = vmatprep.subr.mxu0 0.0
        %2211 = vmatpush1.msra.mxu0 0.0
        %2212 = vmatprep.mubr.f32.mxu0 0.0
        %v2213 = vand.u32 %v1797, 4294901760
        %2214 = vmatmul.mubr.f32.gmra.mrb[0].mxu0 %v2213
        %v2215 = vpop.f32.mrb[0].mxu0
        %v2216 = vadd.f32 %v2131, %v2215
        %v2217 = vpop.f32.mrb[0].mxu0
        %2218 = vmatprep.mubr.f32.mxu0 0.0
        %v2219 = vand.u32 %v1800, 4294901760
        %2220 = vmatmul.mubr.f32.gmra.mrb[0].mxu0 %v2219
        %v2221 = vpop.f32.mrb[0].mxu0
        %v2222 = vadd.f32 %v2139, %v2221
        %v2223 = vpop.f32.mrb[0].mxu0
        %2224 = vdwg.mxu0
        %2225 = vmatprep.subr.mxu0 0.0
        %v2226 = vand.u32 %v218, 4294901760
        %2227 = vmatpush1.msra.mxu0 %v2226
        %2228 = vmatprep.subr.mxu0 0.0
        %v2229 = vand.u32 %v219, 4294901760
        %2230 = vmatpush1.msra.mxu0 %v2229
        %2231 = vmatprep.subr.mxu0 0.0
        %2232 = vmatpush1.msra.mxu0 0.0
        %2233 = vmatprep.subr.mxu0 0.0
        %2234 = vmatpush1.msra.mxu0 0.0
        %2235 = vmatprep.subr.mxu0 0.0
        %2236 = vmatpush1.msra.mxu0 0.0
        %2237 = vmatprep.subr.mxu0 0.0
        %2238 = vmatpush1.msra.mxu0 0.0
        %2239 = vmatprep.subr.mxu0 0.0
        %2240 = vmatpush1.msra.mxu0 0.0
        %2241 = vmatprep.subr.mxu0 0.0
        %2242 = vmatpush1.msra.mxu0 0.0
        %2243 = vmatprep.subr.mxu0 0.0
        %2244 = vmatpush1.msra.mxu0 0.0
        %2245 = vmatprep.subr.mxu0 0.0
        %2246 = vmatpush1.msra.mxu0 0.0
        %2247 = vmatprep.subr.mxu0 0.0
        %2248 = vmatpush1.msra.mxu0 0.0
        %2249 = vmatprep.subr.mxu0 0.0
        %2250 = vmatpush1.msra.mxu0 0.0
        %2251 = vmatprep.subr.mxu0 0.0
        %2252 = vmatpush1.msra.mxu0 0.0
        %2253 = vmatprep.subr.mxu0 0.0
        %2254 = vmatpush1.msra.mxu0 0.0
        %2255 = vmatprep.subr.mxu0 0.0
        %2256 = vmatpush1.msra.mxu0 0.0
        %2257 = vmatprep.subr.mxu0 0.0
        %2258 = vmatpush1.msra.mxu0 0.0
        %2259 = vmatprep.subr.mxu0 0.0
        %2260 = vmatpush1.msra.mxu0 0.0
        %2261 = vmatprep.subr.mxu0 0.0
        %2262 = vmatpush1.msra.mxu0 0.0
        %2263 = vmatprep.subr.mxu0 0.0
        %2264 = vmatpush1.msra.mxu0 0.0
        %2265 = vmatprep.subr.mxu0 0.0
        %2266 = vmatpush1.msra.mxu0 0.0
        %2267 = vmatprep.subr.mxu0 0.0
        %2268 = vmatpush1.msra.mxu0 0.0
        %2269 = vmatprep.subr.mxu0 0.0
        %2270 = vmatpush1.msra.mxu0 0.0
        %2271 = vmatprep.subr.mxu0 0.0
        %2272 = vmatpush1.msra.mxu0 0.0
        %2273 = vmatprep.subr.mxu0 0.0
        %2274 = vmatpush1.msra.mxu0 0.0
        %2275 = vmatprep.subr.mxu0 0.0
        %2276 = vmatpush1.msra.mxu0 0.0
        %2277 = vmatprep.subr.mxu0 0.0
        %2278 = vmatpush1.msra.mxu0 0.0
        %2279 = vmatprep.subr.mxu0 0.0
        %2280 = vmatpush1.msra.mxu0 0.0
        %2281 = vmatprep.subr.mxu0 0.0
        %2282 = vmatpush1.msra.mxu0 0.0
        %2283 = vmatprep.subr.mxu0 0.0
        %2284 = vmatpush1.msra.mxu0 0.0
        %2285 = vmatprep.subr.mxu0 0.0
        %2286 = vmatpush1.msra.mxu0 0.0
        %2287 = vmatprep.subr.mxu0 0.0
        %2288 = vmatpush1.msra.mxu0 0.0
        %2289 = vmatprep.subr.mxu0 0.0
        %2290 = vmatpush1.msra.mxu0 0.0
        %2291 = vmatprep.mubr.f32.mxu0 0.0
        %v2292 = vand.u32 %v1797, 4294901760
        %2293 = vmatmul.mubr.f32.gmra.mrb[0].mxu0 %v2292
        %v2294 = vpop.f32.mrb[0].mxu0
        %v2295 = vadd.f32 %v2216, %v2294
        %v2296 = vpop.f32.mrb[0].mxu0
        %2297 = vmatprep.mubr.f32.mxu0 0.0
        %v2298 = vand.u32 %v1800, 4294901760
        %2299 = vmatmul.mubr.f32.gmra.mrb[0].mxu0 %v2298
        %v2300 = vpop.f32.mrb[0].mxu0
        %v2301 = vadd.f32 %v2222, %v2300
        %v2302 = vpop.f32.mrb[0].mxu0
        %2303 = vdwg.mxu0
        %s2304 = scalar_lea.vmem %s215, 48
        %2305 = vst.msk [vmem:[%s2304] sm:$0xff] %vm731, %v2295
        %2306 = vst.msk [vmem:[%s2304 + $0x8] sm:$0xff] %vm731, %v2301
        %2309 = vrot.lane.b32.xlu0 %v2295, 32
        %v2310 = vpop.permute.xlu0 %2309
        %2311 = vrot.lane.b32.xlu0 %v2301, 32
        %v2312 = vpop.permute.xlu0 %2311
        %2315 = vst.msk [vmem:[%s2304] sm:$0xff] %vm742, %v2310
        %2316 = vst.msk [vmem:[%s2304 + $0x8] sm:$0xff] %vm742, %v2312
        %s2317 = smul.u32 4, %s22
        %s2318 = smul.u32 2, %s23
        %p2319 = scmp.lt.s32.totalorder %s21, 1
        %s2320 = scalar_select %p2319, %s21, 1
        %p2321 = scmp.lt.s32.totalorder %s2317, 3
        %s2322 = scalar_select %p2321, %s2317, 3
        %p2323 = scmp.lt.s32.totalorder %s2318, 1
        %s2324 = scalar_select %p2323, %s2318, 1
        %s2325 = smul.addr %s2322, 2
        %s2326 = sadd.s32 %s2324, %s2325
        %s2327 = smul.addr %s2320, 8
        %s2328 = sadd.s32 %s2326, %s2327
        %s2329 = smul.addr %s2328, 8
        %s2330 = scalar_lea.vmem %s2, %s2329
        // Predicated region
        $region33: #{a_call__.1} parent=27 // pred_check
          %p2331 = pneg %p108
        $region34: #{a_call__.1} parent=27 // pred_check_branch
          %2333 = sbr.rel (%p2331) target = $region36
        $region35: #{a_call__.1} parent=27 // pred_region
          %s2334 = smul.u32 4, %s22
          %s2335 = smul.u32 2, %s23
        $region36: #{a_call__.1} parent=27 // pred_fallthru
          _
      $region28: #{a_call__.1} parent=5 // pred_fallthru
        _
      %p2336 = scmp.le.s32.totalorder 2, %s11
      // Predicated region
      $region37: #{a_call__.1} parent=5 // pred_check
        %p2337 = pneg %p2336
      $region38: #{a_call__.1} parent=5 // pred_check_branch
        %2339 = sbr.rel (%p2337) target = $region40
      $region39: #{a_call__.1} parent=5 // pred_region
        %s2340 = ssub.s32 %s11, 2
        // Predicated region
        $region41: #{a_call__.1} parent=39 // pred_check
          %p2341 = pneg %p114
        $region42: #{a_call__.1} parent=39 // pred_check_branch
          %2343 = sbr.rel (%p2341) target = $region44
        $region43: #{a_call__.1} parent=39 // pred_region
          %s2344 = smul.u32 4, %s25
          %s2345 = smul.u32 2, %s26
          %p2346 = scmp.lt.s32.totalorder %s24, 1
          %s2347 = scalar_select %p2346, %s24, 1
          %p2348 = scmp.lt.s32.totalorder %s2344, 3
          %s2349 = scalar_select %p2348, %s2344, 3
          %p2350 = scmp.lt.s32.totalorder %s2345, 1
          %s2351 = scalar_select %p2350, %s2345, 1
          %s2352 = smul.addr %s2349, 2
          %s2353 = sadd.s32 %s2351, %s2352
          %s2354 = smul.addr %s2347, 8
          %s2355 = sadd.s32 %s2353, %s2354
          %s2356 = smul.addr %s2355, 8
          %s2357 = scalar_lea.vmem %s2, %s2356
        $region44: #{a_call__.1} parent=39 // pred_fallthru
          _
      $region40: #{a_call__.1} parent=5 // pred_fallthru
        _
    $region6: #{a_call__.1} parent=1 // loop_footer
      %s15 = sadd.s32 1, %s11
    $region7: #{a_call__.1} parent=1 // loop_footer_branch
      %10 = sbr.rel target = $region3
    $region8: #{a_call__.1} parent=1 // loop_exit
      _
    %2358 = vsyncpa [#allocation3], 1
    %s2359 = scalar_lea.sflag [#allocation3], 1
    %2360 = vsyncpa %s2359, 1

</llo_original>
